<compile_context>
chip_gen: v6e
topology: v6e:2x2x1
jax: 0.10.0
libtpu: 0.0.40
codegen_flags: <defaults>
</compile_context>

<pallas_src>
import functools

import jax
import jax.numpy as jnp
from jax import lax
from jax.experimental import pallas as pl
from jax.experimental.pallas import tpu as pltpu

# ---------------- problem sizes (small, deterministic) ----------------
N_NODES = 16        # number of graph nodes
IN_DIM = 8          # input feature dim
OUT_DIM = 8         # per-head output dim
HEADS = 4           # attention heads
ALPHA = 0.3         # directional mixing coefficient
N_EDGES = 32        # number of directed edges
NEG_SLOPE = 0.2     # GATConv leaky-relu negative slope
TILE_N = 8          # destination-row tile (grid axis; "parallel" for v7x 2 TCs)
OUT_PAD = 128       # lane-dense padded output width (trimmed in the wrapper)


def _dir_gat_kernel(x_all_ref, x_dst_ref, maskb_ref, w_ref, wadst_ref, wasrc_ref,
                    bias_ref, out_ref, acc_ref, *,
                    heads, out_dim, alpha, neg_slope):
    # source-side features for the whole graph, bf16 for the MXU
    x_all = x_all_ref[...].astype(jnp.bfloat16)          # [N, F]
    x_dst = x_dst_ref[...].astype(jnp.bfloat16)          # [T, F]  (this row tile)

    # fused projection for BOTH directions: [N, F] @ [F, 2*H*C] -> [N, 2*H*C]
    h = jnp.dot(x_all, w_ref[...], preferred_element_type=jnp.float32)
    h_bf = h.astype(jnp.bfloat16)

    # attention scalars via MXU (no cross-lane reductions, no transposes)
    #   a_dst[t, g]   = att_dst_g . (W_g x_dst_t)
    #   a_src_t[g, j] = att_src_g . (W_g x_j)      (already in row form)
    a_dst = jnp.dot(x_dst, wadst_ref[...],
                    preferred_element_type=jnp.float32)               # [T, 2H]
    a_src_t = lax.dot_general(wasrc_ref[...], x_all,
                              (((1,), (1,)), ((), ())),
                              preferred_element_type=jnp.float32)     # [2H, N]

    acc_ref[...] = jnp.zeros_like(acc_ref)                            # [T, 128] f32

    for d in range(2):                                  # 0 = fwd (src->dst), 1 = rev
        w_dir = (1.0 - alpha) if d == 0 else alpha
        mask_b = maskb_ref[d]                           # [T, N] additive bias (0 / -1e30)
        for hh in range(heads):
            g = d * heads + hh                          # packed (direction, head) group
            logits = a_dst[:, g:g + 1] + a_src_t[g:g + 1, :]          # [T, N]
            e = jnp.where(logits >= 0, logits, neg_slope * logits) + mask_b
            e = e - jnp.max(e, axis=-1, keepdims=True)
            p = jnp.exp(e)
            inv = pl.reciprocal(jnp.sum(p, axis=-1, keepdims=True), approx=True)
            attn = (p * inv).astype(jnp.bfloat16)                     # [T, N]
            # aggregation on the MXU: [T, N] @ [N, C] -> [T, C]
            o_h = jnp.dot(attn, h_bf[:, g * out_dim:(g + 1) * out_dim],
                          preferred_element_type=jnp.float32)
            lo = hh * out_dim
            acc_ref[:, lo:lo + out_dim] += w_dir * o_h

    # one full-width, lane-dense store; bias already blended + padded in wrapper
    out_ref[...] = acc_ref[...] + bias_ref[...]


def dir_gat_conv(x, mask_bias, packed, *, heads, out_dim, alpha,
                 tile_n=TILE_N, out_pad=OUT_PAD):
    n, f_in = x.shape
    hc = heads * out_dim
    hc2 = 2 * hc
    kernel = functools.partial(_dir_gat_kernel, heads=heads, out_dim=out_dim,
                               alpha=alpha, neg_slope=NEG_SLOPE)
    out = pl.pallas_call(
        kernel,
        out_shape=jax.ShapeDtypeStruct((n, out_pad), jnp.float32),
        grid_spec=pltpu.PrefetchScalarGridSpec(
            num_scalar_prefetch=0,
            grid=(n // tile_n,),
            in_specs=[
                pl.BlockSpec((n, f_in), lambda i: (0, 0)),           # x (all nodes, src side)
                pl.BlockSpec((tile_n, f_in), lambda i: (i, 0)),      # x (dst rows of this tile)
                pl.BlockSpec((2, tile_n, n), lambda i: (0, i, 0)),   # additive mask bias rows
                pl.BlockSpec((f_in, hc2), lambda i: (0, 0)),         # packed W  (bf16)
                pl.BlockSpec((f_in, 2 * heads), lambda i: (0, 0)),   # W @ att_dst (bf16)
                pl.BlockSpec((2 * heads, f_in), lambda i: (0, 0)),   # att_src @ W^T (bf16)
                pl.BlockSpec((1, out_pad), lambda i: (0, 0)),        # blended, padded bias
            ],
            out_specs=pl.BlockSpec((tile_n, out_pad), lambda i: (i, 0)),
            scratch_shapes=[pltpu.VMEM((tile_n, out_pad), jnp.float32)],
        ),
        compiler_params=pltpu.CompilerParams(
            dimension_semantics=("parallel",),          # v7x: 2 TCs split row tiles
            vmem_limit_bytes=32 * 1024 * 1024),
    )(x, x, mask_bias, packed["w"], packed["wa_dst"], packed["wa_src"],
      packed["bias_pad"])
    return out[:, :hc]                                  # trim lane padding


def build_dense_mask(edge_index, n_nodes):
    """mask[i, j] = 1 iff edge j -> i exists; diagonal forced to 1 (self-loops)."""
    src, dst = edge_index[0], edge_index[1]
    mask = jnp.zeros((n_nodes, n_nodes), jnp.float32)
    mask = mask.at[dst, src].set(1.0)
    idx = jnp.arange(n_nodes)
    mask = mask.at[idx, idx].set(1.0)
    return mask


def init_params(key, in_dim, out_dim, heads):
    ks = jax.random.split(key, 8)
    scale_w = (2.0 / (in_dim + heads * out_dim)) ** 0.5
    scale_a = (2.0 / (out_dim + 1)) ** 0.5
    return {
        "w1": jax.random.normal(ks[0], (in_dim, heads * out_dim), jnp.float32) * scale_w,
        "att_src1": jax.random.normal(ks[1], (heads, out_dim), jnp.float32) * scale_a,
        "att_dst1": jax.random.normal(ks[2], (heads, out_dim), jnp.float32) * scale_a,
        "bias1": jnp.zeros((1, heads * out_dim), jnp.float32),
        "w2": jax.random.normal(ks[3], (in_dim, heads * out_dim), jnp.float32) * scale_w,
        "att_src2": jax.random.normal(ks[4], (heads, out_dim), jnp.float32) * scale_a,
        "att_dst2": jax.random.normal(ks[5], (heads, out_dim), jnp.float32) * scale_a,
        "bias2": jnp.zeros((1, heads * out_dim), jnp.float32),
    }


def pack_params(params, *, in_dim, out_dim, heads, alpha, out_pad=OUT_PAD):
    """Pack per-direction params into a few bf16 tensors (fewer DMAs, MXU-friendly)."""
    w = jnp.concatenate([params["w1"], params["w2"]], axis=1)         # [F, 2*H*C]
    att_dst = jnp.concatenate([params["att_dst1"], params["att_dst2"]], axis=0)  # [2H, C]
    att_src = jnp.concatenate([params["att_src1"], params["att_src2"]], axis=0)  # [2H, C]
    w3 = w.reshape(in_dim, 2 * heads, out_dim)
    wa_dst = jnp.einsum("fgc,gc->fg", w3, att_dst)                    # [F, 2H]
    wa_src = jnp.einsum("fgc,gc->gf", w3, att_src)                    # [2H, F]
    # bias is linear: (1-a)*(agg1 + b1) + a*(agg2 + b2) -> blend biases up front
    bias = (1.0 - alpha) * params["bias1"] + alpha * params["bias2"]  # [1, H*C]
    bias_pad = jnp.zeros((1, out_pad), jnp.float32)
    bias_pad = bias_pad.at[:, :heads * out_dim].set(bias)
    return {
        "w": w.astype(jnp.bfloat16),
        "wa_dst": wa_dst.astype(jnp.bfloat16),
        "wa_src": wa_src.astype(jnp.bfloat16),
        "bias_pad": bias_pad,
    }


if __name__ == "__main__":
    key = jax.random.PRNGKey(0)
    k_x, k_e, k_p = jax.random.split(key, 3)

    # node features
    x = jax.random.normal(k_x, (N_NODES, IN_DIM), jnp.float32)

    # deterministic duplicate-free directed edges (no self loops)
    k_src, k_perm = jax.random.split(k_e)
    src = jax.random.randint(k_src, (N_EDGES,), 0, N_NODES)
    offs = 1 + jax.random.randint(k_perm, (N_EDGES,), 0, N_NODES - 1)
    dst = (src + offs) % N_NODES
    edge_index = jnp.stack([src, dst], axis=0)                        # [2, E]

    # dense additive mask bias for both directions (0 where edge/self-loop, -1e30 else)
    mask_fwd = build_dense_mask(edge_index, N_NODES)
    edge_index_t = jnp.stack([edge_index[1], edge_index[0]], axis=0)
    mask_rev = build_dense_mask(edge_index_t, N_NODES)
    mask_bias = jnp.where(jnp.stack([mask_fwd, mask_rev], axis=0) > 0,
                          0.0, -1e30).astype(jnp.float32)             # [2, N, N]

    params = init_params(k_p, IN_DIM, OUT_DIM, HEADS)
    packed = pack_params(params, in_dim=IN_DIM, out_dim=OUT_DIM, heads=HEADS,
                         alpha=ALPHA)

    out = dir_gat_conv(x, mask_bias, packed,
                       heads=HEADS, out_dim=OUT_DIM, alpha=ALPHA)
    out = jax.block_until_ready(out)
    assert out.shape == (N_NODES, HEADS * OUT_DIM)
    assert bool(jnp.all(jnp.isfinite(out)))
    print("KERNEL_OK")
</pallas_src>

<mosaic_0001>
module attributes {stable_mosaic.version = 11 : i64} {
  func.func @_dir_gat_kernel(%arg0: i32, %arg1: memref<16x8xf32, #tpu.memory_space<vmem>>, %arg2: memref<8x8xf32, #tpu.memory_space<vmem>>, %arg3: memref<2x8x16xf32, #tpu.memory_space<vmem>>, %arg4: memref<8x64xbf16, #tpu.memory_space<vmem>>, %arg5: memref<8x8xbf16, #tpu.memory_space<vmem>>, %arg6: memref<8x8xbf16, #tpu.memory_space<vmem>>, %arg7: memref<1x128xf32, #tpu.memory_space<vmem>>, %arg8: memref<8x128xf32, #tpu.memory_space<vmem>>, %arg9: memref<8x128xf32, #tpu.memory_space<vmem>>) attributes {dimension_semantics = [#tpu.dimension_semantics<parallel>], iteration_bounds = array<i64: 2>, scalar_prefetch = 0 : i64, scratch_operands = 1 : i64, tpu.core_type = #tpu.core_type<tc>, window_params = [{pipeline_mode = #tpu.pipeline_mode<synchronous>, transform_indices = @transform_0, window_bounds = array<i64: 16, 8>}, {transform_indices = @transform_1, window_bounds = array<i64: 8, 8>}, {transform_indices = @transform_2, window_bounds = array<i64: 2, 8, 16>}, {pipeline_mode = #tpu.pipeline_mode<synchronous>, transform_indices = @transform_3, window_bounds = array<i64: 8, 64>}, {pipeline_mode = #tpu.pipeline_mode<synchronous>, transform_indices = @transform_4, window_bounds = array<i64: 8, 8>}, {pipeline_mode = #tpu.pipeline_mode<synchronous>, transform_indices = @transform_5, window_bounds = array<i64: 8, 8>}, {pipeline_mode = #tpu.pipeline_mode<synchronous>, transform_indices = @transform_6, window_bounds = array<i64: 1, 128>}, {transform_indices = @transform_7, window_bounds = array<i64: 8, 128>}]} {
    %c0 = arith.constant 0 : index
    %c0_0 = arith.constant 0 : index
    %0 = vector.load %arg1[%c0, %c0_0] : memref<16x8xf32, #tpu.memory_space<vmem>>, vector<16x8xf32>
    %1 = arith.truncf %0 : vector<16x8xf32> to vector<16x8xbf16>
    %c0_1 = arith.constant 0 : index
    %c0_2 = arith.constant 0 : index
    %2 = vector.load %arg2[%c0_1, %c0_2] : memref<8x8xf32, #tpu.memory_space<vmem>>, vector<8x8xf32>
    %3 = arith.truncf %2 : vector<8x8xf32> to vector<8x8xbf16>
    %c0_3 = arith.constant 0 : index
    %c0_4 = arith.constant 0 : index
    %4 = vector.load %arg4[%c0_3, %c0_4] : memref<8x64xbf16, #tpu.memory_space<vmem>>, vector<8x64xbf16>
    %cst = arith.constant dense<0.000000e+00> : vector<16x64xf32>
    %5 = tpu.matmul %1, %4, %cst {dimension_numbers = #tpu.dot_dimension_numbers<[1], [0], [0], [1], [0, 0, 1, 1], [], []>} : vector<16x8xbf16>, vector<8x64xbf16>, vector<16x64xf32> -> vector<16x64xf32>
    %6 = arith.truncf %5 : vector<16x64xf32> to vector<16x64xbf16>
    %c0_5 = arith.constant 0 : index
    %c0_6 = arith.constant 0 : index
    %7 = vector.load %arg5[%c0_5, %c0_6] : memref<8x8xbf16, #tpu.memory_space<vmem>>, vector<8x8xbf16>
    %cst_7 = arith.constant dense<0.000000e+00> : vector<8x8xf32>
    %8 = tpu.matmul %3, %7, %cst_7 {dimension_numbers = #tpu.dot_dimension_numbers<[1], [0], [0], [1], [0, 0, 1, 1], [], []>} : vector<8x8xbf16>, vector<8x8xbf16>, vector<8x8xf32> -> vector<8x8xf32>
    %c0_8 = arith.constant 0 : index
    %c0_9 = arith.constant 0 : index
    %9 = vector.load %arg6[%c0_8, %c0_9] : memref<8x8xbf16, #tpu.memory_space<vmem>>, vector<8x8xbf16>
    %cst_10 = arith.constant dense<0.000000e+00> : vector<8x16xf32>
    %10 = tpu.matmul %9, %1, %cst_10 {dimension_numbers = #tpu.dot_dimension_numbers<[1], [1], [0], [0], [0, 0, 1, 0], [], []>} : vector<8x8xbf16>, vector<16x8xbf16>, vector<8x16xf32> -> vector<8x16xf32>
    %cst_11 = arith.constant 0.000000e+00 : f32
    %11 = vector.broadcast %cst_11 : f32 to vector<8x128xf32>
    %c0_12 = arith.constant 0 : index
    %c0_13 = arith.constant 0 : index
    %12 = vector.load %arg9[%c0_12, %c0_13] : memref<8x128xf32, #tpu.memory_space<vmem>>, vector<8x128xf32>
    tpu.vector_store %arg9[%c0_12, %c0_13], %11 {strides = array<i32>} : memref<8x128xf32, #tpu.memory_space<vmem>>, vector<8x128xf32>,
    %c0_14 = arith.constant 0 : index
    %c0_15 = arith.constant 0 : index
    %c0_16 = arith.constant 0 : index
    %13 = vector.load %arg3[%c0_14, %c0_15, %c0_16] : memref<2x8x16xf32, #tpu.memory_space<vmem>>, vector<1x8x16xf32>
    %14 = vector.shape_cast %13 : vector<1x8x16xf32> to vector<8x16xf32>
    %15 = vector.extract_strided_slice %8 {offsets = [0, 0], sizes = [8, 1], strides = [1, 1]} : vector<8x8xf32> to vector<8x1xf32>
    %16 = vector.extract_strided_slice %10 {offsets = [0, 0], sizes = [1, 16], strides = [1, 1]} : vector<8x16xf32> to vector<1x16xf32>
    %17 = vector.broadcast %15 : vector<8x1xf32> to vector<8x16xf32>
    %18 = vector.broadcast %16 : vector<1x16xf32> to vector<8x16xf32>
    %19 = arith.addf %17, %18 : vector<8x16xf32>
    %cst_17 = arith.constant 0.000000e+00 : f32
    %20 = vector.broadcast %cst_17 : f32 to vector<8x16xf32>
    %21 = arith.cmpf oge, %19, %20 : vector<8x16xf32>
    %cst_18 = arith.constant 2.000000e-01 : f32
    %22 = vector.broadcast %cst_18 : f32 to vector<8x16xf32>
    %23 = arith.mulf %22, %19 : vector<8x16xf32>
    %24 = arith.select %21, %19, %23 : vector<8x16xi1>, vector<8x16xf32>
    %25 = arith.addf %24, %14 : vector<8x16xf32>
    %cst_19 = arith.constant dense<0xFF800000> : vector<8xf32>
    %26 = vector.multi_reduction <maximumf>, %25, %cst_19 [1] : vector<8x16xf32> to vector<8xf32>
    %27 = vector.shape_cast %26 : vector<8xf32> to vector<8x1xf32>
    %28 = vector.broadcast %27 : vector<8x1xf32> to vector<8x16xf32>
    %29 = arith.subf %25, %28 : vector<8x16xf32>
    %30 = math.exp %29 : vector<8x16xf32>
    %cst_20 = arith.constant dense<0.000000e+00> : vector<8xf32>
    %31 = vector.multi_reduction <add>, %30, %cst_20 [1] : vector<8x16xf32> to vector<8xf32>
    %32 = vector.shape_cast %31 : vector<8xf32> to vector<8x1xf32>
    %33 = tpu.reciprocal %32 {approx = true} : vector<8x1xf32> -> vector<8x1xf32>
    %34 = vector.broadcast %33 : vector<8x1xf32> to vector<8x16xf32>
    %35 = arith.mulf %30, %34 : vector<8x16xf32>
    %36 = arith.truncf %35 : vector<8x16xf32> to vector<8x16xbf16>
    %37 = vector.extract_strided_slice %6 {offsets = [0, 0], sizes = [16, 8], strides = [1, 1]} : vector<16x64xbf16> to vector<16x8xbf16>
    %cst_21 = arith.constant dense<0.000000e+00> : vector<8x8xf32>
    %38 = tpu.matmul %36, %37, %cst_21 {dimension_numbers = #tpu.dot_dimension_numbers<[1], [0], [0], [1], [0, 0, 1, 1], [], []>} : vector<8x16xbf16>, vector<16x8xbf16>, vector<8x8xf32> -> vector<8x8xf32>
    %c0_22 = arith.constant 0 : index
    %c0_23 = arith.constant 0 : index
    %39 = vector.load %arg9[%c0_22, %c0_23] : memref<8x128xf32, #tpu.memory_space<vmem>>, vector<8x8xf32>
    %cst_24 = arith.constant 0.699999988 : f32
    %40 = vector.broadcast %cst_24 : f32 to vector<8x8xf32>
    %41 = arith.mulf %40, %38 : vector<8x8xf32>
    %42 = arith.addf %39, %41 : vector<8x8xf32>
    %c0_25 = arith.constant 0 : index
    %c0_26 = arith.constant 0 : index
    %43 = vector.load %arg9[%c0_25, %c0_26] : memref<8x128xf32, #tpu.memory_space<vmem>>, vector<8x8xf32>
    tpu.vector_store %arg9[%c0_25, %c0_26], %42 {strides = array<i32>} : memref<8x128xf32, #tpu.memory_space<vmem>>, vector<8x8xf32>,
    %44 = vector.extract_strided_slice %8 {offsets = [0, 1], sizes = [8, 1], strides = [1, 1]} : vector<8x8xf32> to vector<8x1xf32>
    %45 = vector.extract_strided_slice %10 {offsets = [1, 0], sizes = [1, 16], strides = [1, 1]} : vector<8x16xf32> to vector<1x16xf32>
    %46 = vector.broadcast %44 : vector<8x1xf32> to vector<8x16xf32>
    %47 = vector.broadcast %45 : vector<1x16xf32> to vector<8x16xf32>
    %48 = arith.addf %46, %47 : vector<8x16xf32>
    %cst_27 = arith.constant 0.000000e+00 : f32
    %49 = vector.broadcast %cst_27 : f32 to vector<8x16xf32>
    %50 = arith.cmpf oge, %48, %49 : vector<8x16xf32>
    %cst_28 = arith.constant 2.000000e-01 : f32
    %51 = vector.broadcast %cst_28 : f32 to vector<8x16xf32>
    %52 = arith.mulf %51, %48 : vector<8x16xf32>
    %53 = arith.select %50, %48, %52 : vector<8x16xi1>, vector<8x16xf32>
    %54 = arith.addf %53, %14 : vector<8x16xf32>
    %cst_29 = arith.constant dense<0xFF800000> : vector<8xf32>
    %55 = vector.multi_reduction <maximumf>, %54, %cst_29 [1] : vector<8x16xf32> to vector<8xf32>
    %56 = vector.shape_cast %55 : vector<8xf32> to vector<8x1xf32>
    %57 = vector.broadcast %56 : vector<8x1xf32> to vector<8x16xf32>
    %58 = arith.subf %54, %57 : vector<8x16xf32>
    %59 = math.exp %58 : vector<8x16xf32>
    %cst_30 = arith.constant dense<0.000000e+00> : vector<8xf32>
    %60 = vector.multi_reduction <add>, %59, %cst_30 [1] : vector<8x16xf32> to vector<8xf32>
    %61 = vector.shape_cast %60 : vector<8xf32> to vector<8x1xf32>
    %62 = tpu.reciprocal %61 {approx = true} : vector<8x1xf32> -> vector<8x1xf32>
    %63 = vector.broadcast %62 : vector<8x1xf32> to vector<8x16xf32>
    %64 = arith.mulf %59, %63 : vector<8x16xf32>
    %65 = arith.truncf %64 : vector<8x16xf32> to vector<8x16xbf16>
    %66 = vector.extract_strided_slice %6 {offsets = [0, 8], sizes = [16, 8], strides = [1, 1]} : vector<16x64xbf16> to vector<16x8xbf16>
    %cst_31 = arith.constant dense<0.000000e+00> : vector<8x8xf32>
    %67 = tpu.matmul %65, %66, %cst_31 {dimension_numbers = #tpu.dot_dimension_numbers<[1], [0], [0], [1], [0, 0, 1, 1], [], []>} : vector<8x16xbf16>, vector<16x8xbf16>, vector<8x8xf32> -> vector<8x8xf32>
    %c0_32 = arith.constant 0 : index
    %c8 = arith.constant 8 : index
    %68 = vector.load %arg9[%c0_32, %c8] : memref<8x128xf32, #tpu.memory_space<vmem>>, vector<8x8xf32>
    %cst_33 = arith.constant 0.699999988 : f32
    %69 = vector.broadcast %cst_33 : f32 to vector<8x8xf32>
    %70 = arith.mulf %69, %67 : vector<8x8xf32>
    %71 = arith.addf %68, %70 : vector<8x8xf32>
    %c0_34 = arith.constant 0 : index
    %c8_35 = arith.constant 8 : index
    %72 = vector.load %arg9[%c0_34, %c8_35] : memref<8x128xf32, #tpu.memory_space<vmem>>, vector<8x8xf32>
    tpu.vector_store %arg9[%c0_34, %c8_35], %71 {strides = array<i32>} : memref<8x128xf32, #tpu.memory_space<vmem>>, vector<8x8xf32>,
    %73 = vector.extract_strided_slice %8 {offsets = [0, 2], sizes = [8, 1], strides = [1, 1]} : vector<8x8xf32> to vector<8x1xf32>
    %74 = vector.extract_strided_slice %10 {offsets = [2, 0], sizes = [1, 16], strides = [1, 1]} : vector<8x16xf32> to vector<1x16xf32>
    %75 = vector.broadcast %73 : vector<8x1xf32> to vector<8x16xf32>
    %76 = vector.broadcast %74 : vector<1x16xf32> to vector<8x16xf32>
    %77 = arith.addf %75, %76 : vector<8x16xf32>
    %cst_36 = arith.constant 0.000000e+00 : f32
    %78 = vector.broadcast %cst_36 : f32 to vector<8x16xf32>
    %79 = arith.cmpf oge, %77, %78 : vector<8x16xf32>
    %cst_37 = arith.constant 2.000000e-01 : f32
    %80 = vector.broadcast %cst_37 : f32 to vector<8x16xf32>
    %81 = arith.mulf %80, %77 : vector<8x16xf32>
    %82 = arith.select %79, %77, %81 : vector<8x16xi1>, vector<8x16xf32>
    %83 = arith.addf %82, %14 : vector<8x16xf32>
    %cst_38 = arith.constant dense<0xFF800000> : vector<8xf32>
    %84 = vector.multi_reduction <maximumf>, %83, %cst_38 [1] : vector<8x16xf32> to vector<8xf32>
    %85 = vector.shape_cast %84 : vector<8xf32> to vector<8x1xf32>
    %86 = vector.broadcast %85 : vector<8x1xf32> to vector<8x16xf32>
    %87 = arith.subf %83, %86 : vector<8x16xf32>
    %88 = math.exp %87 : vector<8x16xf32>
    %cst_39 = arith.constant dense<0.000000e+00> : vector<8xf32>
    %89 = vector.multi_reduction <add>, %88, %cst_39 [1] : vector<8x16xf32> to vector<8xf32>
    %90 = vector.shape_cast %89 : vector<8xf32> to vector<8x1xf32>
    %91 = tpu.reciprocal %90 {approx = true} : vector<8x1xf32> -> vector<8x1xf32>
    %92 = vector.broadcast %91 : vector<8x1xf32> to vector<8x16xf32>
    %93 = arith.mulf %88, %92 : vector<8x16xf32>
    %94 = arith.truncf %93 : vector<8x16xf32> to vector<8x16xbf16>
    %95 = vector.extract_strided_slice %6 {offsets = [0, 16], sizes = [16, 8], strides = [1, 1]} : vector<16x64xbf16> to vector<16x8xbf16>
    %cst_40 = arith.constant dense<0.000000e+00> : vector<8x8xf32>
    %96 = tpu.matmul %94, %95, %cst_40 {dimension_numbers = #tpu.dot_dimension_numbers<[1], [0], [0], [1], [0, 0, 1, 1], [], []>} : vector<8x16xbf16>, vector<16x8xbf16>, vector<8x8xf32> -> vector<8x8xf32>
    %c0_41 = arith.constant 0 : index
    %c16 = arith.constant 16 : index
    %97 = vector.load %arg9[%c0_41, %c16] : memref<8x128xf32, #tpu.memory_space<vmem>>, vector<8x8xf32>
    %cst_42 = arith.constant 0.699999988 : f32
    %98 = vector.broadcast %cst_42 : f32 to vector<8x8xf32>
    %99 = arith.mulf %98, %96 : vector<8x8xf32>
    %100 = arith.addf %97, %99 : vector<8x8xf32>
    %c0_43 = arith.constant 0 : index
    %c16_44 = arith.constant 16 : index
    %101 = vector.load %arg9[%c0_43, %c16_44] : memref<8x128xf32, #tpu.memory_space<vmem>>, vector<8x8xf32>
    tpu.vector_store %arg9[%c0_43, %c16_44], %100 {strides = array<i32>} : memref<8x128xf32, #tpu.memory_space<vmem>>, vector<8x8xf32>,
    %102 = vector.extract_strided_slice %8 {offsets = [0, 3], sizes = [8, 1], strides = [1, 1]} : vector<8x8xf32> to vector<8x1xf32>
    %103 = vector.extract_strided_slice %10 {offsets = [3, 0], sizes = [1, 16], strides = [1, 1]} : vector<8x16xf32> to vector<1x16xf32>
    %104 = vector.broadcast %102 : vector<8x1xf32> to vector<8x16xf32>
    %105 = vector.broadcast %103 : vector<1x16xf32> to vector<8x16xf32>
    %106 = arith.addf %104, %105 : vector<8x16xf32>
    %cst_45 = arith.constant 0.000000e+00 : f32
    %107 = vector.broadcast %cst_45 : f32 to vector<8x16xf32>
    %108 = arith.cmpf oge, %106, %107 : vector<8x16xf32>
    %cst_46 = arith.constant 2.000000e-01 : f32
    %109 = vector.broadcast %cst_46 : f32 to vector<8x16xf32>
    %110 = arith.mulf %109, %106 : vector<8x16xf32>
    %111 = arith.select %108, %106, %110 : vector<8x16xi1>, vector<8x16xf32>
    %112 = arith.addf %111, %14 : vector<8x16xf32>
    %cst_47 = arith.constant dense<0xFF800000> : vector<8xf32>
    %113 = vector.multi_reduction <maximumf>, %112, %cst_47 [1] : vector<8x16xf32> to vector<8xf32>
    %114 = vector.shape_cast %113 : vector<8xf32> to vector<8x1xf32>
    %115 = vector.broadcast %114 : vector<8x1xf32> to vector<8x16xf32>
    %116 = arith.subf %112, %115 : vector<8x16xf32>
    %117 = math.exp %116 : vector<8x16xf32>
    %cst_48 = arith.constant dense<0.000000e+00> : vector<8xf32>
    %118 = vector.multi_reduction <add>, %117, %cst_48 [1] : vector<8x16xf32> to vector<8xf32>
    %119 = vector.shape_cast %118 : vector<8xf32> to vector<8x1xf32>
    %120 = tpu.reciprocal %119 {approx = true} : vector<8x1xf32> -> vector<8x1xf32>
    %121 = vector.broadcast %120 : vector<8x1xf32> to vector<8x16xf32>
    %122 = arith.mulf %117, %121 : vector<8x16xf32>
    %123 = arith.truncf %122 : vector<8x16xf32> to vector<8x16xbf16>
    %124 = vector.extract_strided_slice %6 {offsets = [0, 24], sizes = [16, 8], strides = [1, 1]} : vector<16x64xbf16> to vector<16x8xbf16>
    %cst_49 = arith.constant dense<0.000000e+00> : vector<8x8xf32>
    %125 = tpu.matmul %123, %124, %cst_49 {dimension_numbers = #tpu.dot_dimension_numbers<[1], [0], [0], [1], [0, 0, 1, 1], [], []>} : vector<8x16xbf16>, vector<16x8xbf16>, vector<8x8xf32> -> vector<8x8xf32>
    %c0_50 = arith.constant 0 : index
    %c24 = arith.constant 24 : index
    %126 = vector.load %arg9[%c0_50, %c24] : memref<8x128xf32, #tpu.memory_space<vmem>>, vector<8x8xf32>
    %cst_51 = arith.constant 0.699999988 : f32
    %127 = vector.broadcast %cst_51 : f32 to vector<8x8xf32>
    %128 = arith.mulf %127, %125 : vector<8x8xf32>
    %129 = arith.addf %126, %128 : vector<8x8xf32>
    %c0_52 = arith.constant 0 : index
    %c24_53 = arith.constant 24 : index
    %130 = vector.load %arg9[%c0_52, %c24_53] : memref<8x128xf32, #tpu.memory_space<vmem>>, vector<8x8xf32>
    tpu.vector_store %arg9[%c0_52, %c24_53], %129 {strides = array<i32>} : memref<8x128xf32, #tpu.memory_space<vmem>>, vector<8x8xf32>,
    %c1 = arith.constant 1 : index
    %c0_54 = arith.constant 0 : index
    %c0_55 = arith.constant 0 : index
    %131 = vector.load %arg3[%c1, %c0_54, %c0_55] : memref<2x8x16xf32, #tpu.memory_space<vmem>>, vector<1x8x16xf32>
    %132 = vector.shape_cast %131 : vector<1x8x16xf32> to vector<8x16xf32>
    %133 = vector.extract_strided_slice %8 {offsets = [0, 4], sizes = [8, 1], strides = [1, 1]} : vector<8x8xf32> to vector<8x1xf32>
    %134 = vector.extract_strided_slice %10 {offsets = [4, 0], sizes = [1, 16], strides = [1, 1]} : vector<8x16xf32> to vector<1x16xf32>
    %135 = vector.broadcast %133 : vector<8x1xf32> to vector<8x16xf32>
    %136 = vector.broadcast %134 : vector<1x16xf32> to vector<8x16xf32>
    %137 = arith.addf %135, %136 : vector<8x16xf32>
    %cst_56 = arith.constant 0.000000e+00 : f32
    %138 = vector.broadcast %cst_56 : f32 to vector<8x16xf32>
    %139 = arith.cmpf oge, %137, %138 : vector<8x16xf32>
    %cst_57 = arith.constant 2.000000e-01 : f32
    %140 = vector.broadcast %cst_57 : f32 to vector<8x16xf32>
    %141 = arith.mulf %140, %137 : vector<8x16xf32>
    %142 = arith.select %139, %137, %141 : vector<8x16xi1>, vector<8x16xf32>
    %143 = arith.addf %142, %132 : vector<8x16xf32>
    %cst_58 = arith.constant dense<0xFF800000> : vector<8xf32>
    %144 = vector.multi_reduction <maximumf>, %143, %cst_58 [1] : vector<8x16xf32> to vector<8xf32>
    %145 = vector.shape_cast %144 : vector<8xf32> to vector<8x1xf32>
    %146 = vector.broadcast %145 : vector<8x1xf32> to vector<8x16xf32>
    %147 = arith.subf %143, %146 : vector<8x16xf32>
    %148 = math.exp %147 : vector<8x16xf32>
    %cst_59 = arith.constant dense<0.000000e+00> : vector<8xf32>
    %149 = vector.multi_reduction <add>, %148, %cst_59 [1] : vector<8x16xf32> to vector<8xf32>
    %150 = vector.shape_cast %149 : vector<8xf32> to vector<8x1xf32>
    %151 = tpu.reciprocal %150 {approx = true} : vector<8x1xf32> -> vector<8x1xf32>
    %152 = vector.broadcast %151 : vector<8x1xf32> to vector<8x16xf32>
    %153 = arith.mulf %148, %152 : vector<8x16xf32>
    %154 = arith.truncf %153 : vector<8x16xf32> to vector<8x16xbf16>
    %155 = vector.extract_strided_slice %6 {offsets = [0, 32], sizes = [16, 8], strides = [1, 1]} : vector<16x64xbf16> to vector<16x8xbf16>
    %cst_60 = arith.constant dense<0.000000e+00> : vector<8x8xf32>
    %156 = tpu.matmul %154, %155, %cst_60 {dimension_numbers = #tpu.dot_dimension_numbers<[1], [0], [0], [1], [0, 0, 1, 1], [], []>} : vector<8x16xbf16>, vector<16x8xbf16>, vector<8x8xf32> -> vector<8x8xf32>
    %c0_61 = arith.constant 0 : index
    %c0_62 = arith.constant 0 : index
    %157 = vector.load %arg9[%c0_61, %c0_62] : memref<8x128xf32, #tpu.memory_space<vmem>>, vector<8x8xf32>
    %cst_63 = arith.constant 3.000000e-01 : f32
    %158 = vector.broadcast %cst_63 : f32 to vector<8x8xf32>
    %159 = arith.mulf %158, %156 : vector<8x8xf32>
    %160 = arith.addf %157, %159 : vector<8x8xf32>
    %c0_64 = arith.constant 0 : index
    %c0_65 = arith.constant 0 : index
    %161 = vector.load %arg9[%c0_64, %c0_65] : memref<8x128xf32, #tpu.memory_space<vmem>>, vector<8x8xf32>
    tpu.vector_store %arg9[%c0_64, %c0_65], %160 {strides = array<i32>} : memref<8x128xf32, #tpu.memory_space<vmem>>, vector<8x8xf32>,
    %162 = vector.extract_strided_slice %8 {offsets = [0, 5], sizes = [8, 1], strides = [1, 1]} : vector<8x8xf32> to vector<8x1xf32>
    %163 = vector.extract_strided_slice %10 {offsets = [5, 0], sizes = [1, 16], strides = [1, 1]} : vector<8x16xf32> to vector<1x16xf32>
    %164 = vector.broadcast %162 : vector<8x1xf32> to vector<8x16xf32>
    %165 = vector.broadcast %163 : vector<1x16xf32> to vector<8x16xf32>
    %166 = arith.addf %164, %165 : vector<8x16xf32>
    %cst_66 = arith.constant 0.000000e+00 : f32
    %167 = vector.broadcast %cst_66 : f32 to vector<8x16xf32>
    %168 = arith.cmpf oge, %166, %167 : vector<8x16xf32>
    %cst_67 = arith.constant 2.000000e-01 : f32
    %169 = vector.broadcast %cst_67 : f32 to vector<8x16xf32>
    %170 = arith.mulf %169, %166 : vector<8x16xf32>
    %171 = arith.select %168, %166, %170 : vector<8x16xi1>, vector<8x16xf32>
    %172 = arith.addf %171, %132 : vector<8x16xf32>
    %cst_68 = arith.constant dense<0xFF800000> : vector<8xf32>
    %173 = vector.multi_reduction <maximumf>, %172, %cst_68 [1] : vector<8x16xf32> to vector<8xf32>
    %174 = vector.shape_cast %173 : vector<8xf32> to vector<8x1xf32>
    %175 = vector.broadcast %174 : vector<8x1xf32> to vector<8x16xf32>
    %176 = arith.subf %172, %175 : vector<8x16xf32>
    %177 = math.exp %176 : vector<8x16xf32>
    %cst_69 = arith.constant dense<0.000000e+00> : vector<8xf32>
    %178 = vector.multi_reduction <add>, %177, %cst_69 [1] : vector<8x16xf32> to vector<8xf32>
    %179 = vector.shape_cast %178 : vector<8xf32> to vector<8x1xf32>
    %180 = tpu.reciprocal %179 {approx = true} : vector<8x1xf32> -> vector<8x1xf32>
    %181 = vector.broadcast %180 : vector<8x1xf32> to vector<8x16xf32>
    %182 = arith.mulf %177, %181 : vector<8x16xf32>
    %183 = arith.truncf %182 : vector<8x16xf32> to vector<8x16xbf16>
    %184 = vector.extract_strided_slice %6 {offsets = [0, 40], sizes = [16, 8], strides = [1, 1]} : vector<16x64xbf16> to vector<16x8xbf16>
    %cst_70 = arith.constant dense<0.000000e+00> : vector<8x8xf32>
    %185 = tpu.matmul %183, %184, %cst_70 {dimension_numbers = #tpu.dot_dimension_numbers<[1], [0], [0], [1], [0, 0, 1, 1], [], []>} : vector<8x16xbf16>, vector<16x8xbf16>, vector<8x8xf32> -> vector<8x8xf32>
    %c0_71 = arith.constant 0 : index
    %c8_72 = arith.constant 8 : index
    %186 = vector.load %arg9[%c0_71, %c8_72] : memref<8x128xf32, #tpu.memory_space<vmem>>, vector<8x8xf32>
    %cst_73 = arith.constant 3.000000e-01 : f32
    %187 = vector.broadcast %cst_73 : f32 to vector<8x8xf32>
    %188 = arith.mulf %187, %185 : vector<8x8xf32>
    %189 = arith.addf %186, %188 : vector<8x8xf32>
    %c0_74 = arith.constant 0 : index
    %c8_75 = arith.constant 8 : index
    %190 = vector.load %arg9[%c0_74, %c8_75] : memref<8x128xf32, #tpu.memory_space<vmem>>, vector<8x8xf32>
    tpu.vector_store %arg9[%c0_74, %c8_75], %189 {strides = array<i32>} : memref<8x128xf32, #tpu.memory_space<vmem>>, vector<8x8xf32>,
    %191 = vector.extract_strided_slice %8 {offsets = [0, 6], sizes = [8, 1], strides = [1, 1]} : vector<8x8xf32> to vector<8x1xf32>
    %192 = vector.extract_strided_slice %10 {offsets = [6, 0], sizes = [1, 16], strides = [1, 1]} : vector<8x16xf32> to vector<1x16xf32>
    %193 = vector.broadcast %191 : vector<8x1xf32> to vector<8x16xf32>
    %194 = vector.broadcast %192 : vector<1x16xf32> to vector<8x16xf32>
    %195 = arith.addf %193, %194 : vector<8x16xf32>
    %cst_76 = arith.constant 0.000000e+00 : f32
    %196 = vector.broadcast %cst_76 : f32 to vector<8x16xf32>
    %197 = arith.cmpf oge, %195, %196 : vector<8x16xf32>
    %cst_77 = arith.constant 2.000000e-01 : f32
    %198 = vector.broadcast %cst_77 : f32 to vector<8x16xf32>
    %199 = arith.mulf %198, %195 : vector<8x16xf32>
    %200 = arith.select %197, %195, %199 : vector<8x16xi1>, vector<8x16xf32>
    %201 = arith.addf %200, %132 : vector<8x16xf32>
    %cst_78 = arith.constant dense<0xFF800000> : vector<8xf32>
    %202 = vector.multi_reduction <maximumf>, %201, %cst_78 [1] : vector<8x16xf32> to vector<8xf32>
    %203 = vector.shape_cast %202 : vector<8xf32> to vector<8x1xf32>
    %204 = vector.broadcast %203 : vector<8x1xf32> to vector<8x16xf32>
    %205 = arith.subf %201, %204 : vector<8x16xf32>
    %206 = math.exp %205 : vector<8x16xf32>
    %cst_79 = arith.constant dense<0.000000e+00> : vector<8xf32>
    %207 = vector.multi_reduction <add>, %206, %cst_79 [1] : vector<8x16xf32> to vector<8xf32>
    %208 = vector.shape_cast %207 : vector<8xf32> to vector<8x1xf32>
    %209 = tpu.reciprocal %208 {approx = true} : vector<8x1xf32> -> vector<8x1xf32>
    %210 = vector.broadcast %209 : vector<8x1xf32> to vector<8x16xf32>
    %211 = arith.mulf %206, %210 : vector<8x16xf32>
    %212 = arith.truncf %211 : vector<8x16xf32> to vector<8x16xbf16>
    %213 = vector.extract_strided_slice %6 {offsets = [0, 48], sizes = [16, 8], strides = [1, 1]} : vector<16x64xbf16> to vector<16x8xbf16>
    %cst_80 = arith.constant dense<0.000000e+00> : vector<8x8xf32>
    %214 = tpu.matmul %212, %213, %cst_80 {dimension_numbers = #tpu.dot_dimension_numbers<[1], [0], [0], [1], [0, 0, 1, 1], [], []>} : vector<8x16xbf16>, vector<16x8xbf16>, vector<8x8xf32> -> vector<8x8xf32>
    %c0_81 = arith.constant 0 : index
    %c16_82 = arith.constant 16 : index
    %215 = vector.load %arg9[%c0_81, %c16_82] : memref<8x128xf32, #tpu.memory_space<vmem>>, vector<8x8xf32>
    %cst_83 = arith.constant 3.000000e-01 : f32
    %216 = vector.broadcast %cst_83 : f32 to vector<8x8xf32>
    %217 = arith.mulf %216, %214 : vector<8x8xf32>
    %218 = arith.addf %215, %217 : vector<8x8xf32>
    %c0_84 = arith.constant 0 : index
    %c16_85 = arith.constant 16 : index
    %219 = vector.load %arg9[%c0_84, %c16_85] : memref<8x128xf32, #tpu.memory_space<vmem>>, vector<8x8xf32>
    tpu.vector_store %arg9[%c0_84, %c16_85], %218 {strides = array<i32>} : memref<8x128xf32, #tpu.memory_space<vmem>>, vector<8x8xf32>,
    %220 = vector.extract_strided_slice %8 {offsets = [0, 7], sizes = [8, 1], strides = [1, 1]} : vector<8x8xf32> to vector<8x1xf32>
    %221 = vector.extract_strided_slice %10 {offsets = [7, 0], sizes = [1, 16], strides = [1, 1]} : vector<8x16xf32> to vector<1x16xf32>
    %222 = vector.broadcast %220 : vector<8x1xf32> to vector<8x16xf32>
    %223 = vector.broadcast %221 : vector<1x16xf32> to vector<8x16xf32>
    %224 = arith.addf %222, %223 : vector<8x16xf32>
    %cst_86 = arith.constant 0.000000e+00 : f32
    %225 = vector.broadcast %cst_86 : f32 to vector<8x16xf32>
    %226 = arith.cmpf oge, %224, %225 : vector<8x16xf32>
    %cst_87 = arith.constant 2.000000e-01 : f32
    %227 = vector.broadcast %cst_87 : f32 to vector<8x16xf32>
    %228 = arith.mulf %227, %224 : vector<8x16xf32>
    %229 = arith.select %226, %224, %228 : vector<8x16xi1>, vector<8x16xf32>
    %230 = arith.addf %229, %132 : vector<8x16xf32>
    %cst_88 = arith.constant dense<0xFF800000> : vector<8xf32>
    %231 = vector.multi_reduction <maximumf>, %230, %cst_88 [1] : vector<8x16xf32> to vector<8xf32>
    %232 = vector.shape_cast %231 : vector<8xf32> to vector<8x1xf32>
    %233 = vector.broadcast %232 : vector<8x1xf32> to vector<8x16xf32>
    %234 = arith.subf %230, %233 : vector<8x16xf32>
    %235 = math.exp %234 : vector<8x16xf32>
    %cst_89 = arith.constant dense<0.000000e+00> : vector<8xf32>
    %236 = vector.multi_reduction <add>, %235, %cst_89 [1] : vector<8x16xf32> to vector<8xf32>
    %237 = vector.shape_cast %236 : vector<8xf32> to vector<8x1xf32>
    %238 = tpu.reciprocal %237 {approx = true} : vector<8x1xf32> -> vector<8x1xf32>
    %239 = vector.broadcast %238 : vector<8x1xf32> to vector<8x16xf32>
    %240 = arith.mulf %235, %239 : vector<8x16xf32>
    %241 = arith.truncf %240 : vector<8x16xf32> to vector<8x16xbf16>
    %242 = vector.extract_strided_slice %6 {offsets = [0, 56], sizes = [16, 8], strides = [1, 1]} : vector<16x64xbf16> to vector<16x8xbf16>
    %cst_90 = arith.constant dense<0.000000e+00> : vector<8x8xf32>
    %243 = tpu.matmul %241, %242, %cst_90 {dimension_numbers = #tpu.dot_dimension_numbers<[1], [0], [0], [1], [0, 0, 1, 1], [], []>} : vector<8x16xbf16>, vector<16x8xbf16>, vector<8x8xf32> -> vector<8x8xf32>
    %c0_91 = arith.constant 0 : index
    %c24_92 = arith.constant 24 : index
    %244 = vector.load %arg9[%c0_91, %c24_92] : memref<8x128xf32, #tpu.memory_space<vmem>>, vector<8x8xf32>
    %cst_93 = arith.constant 3.000000e-01 : f32
    %245 = vector.broadcast %cst_93 : f32 to vector<8x8xf32>
    %246 = arith.mulf %245, %243 : vector<8x8xf32>
    %247 = arith.addf %244, %246 : vector<8x8xf32>
    %c0_94 = arith.constant 0 : index
    %c24_95 = arith.constant 24 : index
    %248 = vector.load %arg9[%c0_94, %c24_95] : memref<8x128xf32, #tpu.memory_space<vmem>>, vector<8x8xf32>
    tpu.vector_store %arg9[%c0_94, %c24_95], %247 {strides = array<i32>} : memref<8x128xf32, #tpu.memory_space<vmem>>, vector<8x8xf32>,
    %c0_96 = arith.constant 0 : index
    %c0_97 = arith.constant 0 : index
    %249 = vector.load %arg9[%c0_96, %c0_97] : memref<8x128xf32, #tpu.memory_space<vmem>>, vector<8x128xf32>
    %c0_98 = arith.constant 0 : index
    %c0_99 = arith.constant 0 : index
    %250 = vector.load %arg7[%c0_98, %c0_99] : memref<1x128xf32, #tpu.memory_space<vmem>>, vector<1x128xf32>
    %251 = vector.broadcast %250 : vector<1x128xf32> to vector<8x128xf32>
    %252 = arith.addf %249, %251 : vector<8x128xf32>
    %c0_100 = arith.constant 0 : index
    %c0_101 = arith.constant 0 : index
    %253 = vector.load %arg8[%c0_100, %c0_101] : memref<8x128xf32, #tpu.memory_space<vmem>>, vector<8x128xf32>
    tpu.vector_store %arg8[%c0_100, %c0_101], %252 {strides = array<i32>} : memref<8x128xf32, #tpu.memory_space<vmem>>, vector<8x128xf32>,
    return
  }
  func.func @transform_0(%arg0: i32) -> (i32, i32) {
    %c0_i32 = arith.constant 0 : i32
    %c0_i32_0 = arith.constant 0 : i32
    %c0_i32_1 = arith.constant 0 : i32
    return %c0_i32, %c0_i32_0 : i32, i32
  }
  func.func @transform_1(%arg0: i32) -> (i32, i32) {
    %c0_i32 = arith.constant 0 : i32
    %c0_i32_0 = arith.constant 0 : i32
    return %arg0, %c0_i32 : i32, i32
  }
  func.func @transform_2(%arg0: i32) -> (i32, i32, i32) {
    %c0_i32 = arith.constant 0 : i32
    %c0_i32_0 = arith.constant 0 : i32
    %c0_i32_1 = arith.constant 0 : i32
    return %c0_i32, %arg0, %c0_i32_0 : i32, i32, i32
  }
  func.func @transform_3(%arg0: i32) -> (i32, i32) {
    %c0_i32 = arith.constant 0 : i32
    %c0_i32_0 = arith.constant 0 : i32
    %c0_i32_1 = arith.constant 0 : i32
    return %c0_i32, %c0_i32_0 : i32, i32
  }
  func.func @transform_4(%arg0: i32) -> (i32, i32) {
    %c0_i32 = arith.constant 0 : i32
    %c0_i32_0 = arith.constant 0 : i32
    %c0_i32_1 = arith.constant 0 : i32
    return %c0_i32, %c0_i32_0 : i32, i32
  }
  func.func @transform_5(%arg0: i32) -> (i32, i32) {
    %c0_i32 = arith.constant 0 : i32
    %c0_i32_0 = arith.constant 0 : i32
    %c0_i32_1 = arith.constant 0 : i32
    return %c0_i32, %c0_i32_0 : i32, i32
  }
  func.func @transform_6(%arg0: i32) -> (i32, i32) {
    %c0_i32 = arith.constant 0 : i32
    %c0_i32_0 = arith.constant 0 : i32
    %c0_i32_1 = arith.constant 0 : i32
    return %c0_i32, %c0_i32_0 : i32, i32
  }
  func.func @transform_7(%arg0: i32) -> (i32, i32) {
    %c0_i32 = arith.constant 0 : i32
    %c0_i32_0 = arith.constant 0 : i32
    return %arg0, %c0_i32 : i32, i32
  }
}

</mosaic_0001>

<llo_original>
// kernel: tpu_custom_call.1
$region0: #{tpu_custom_call.1}
  #allocation0 [shape = 'u32[]', space=smem, size = 0x4, offset = 0x4, fixed_abs, tag = 'smem constant byte address 0x4 - core index']
  #allocation1 [shape = 'u32[144,128]{1,0:T(1,128)}', space=vmem, size = 0x12000, scoped, tag = 'internal scratch']
  #allocation2 [shape = 'f32[8,128]{1,0:T(8,128)}', space=vmem, size = 0x1000, scoped, tag = 'scratch operand']
  %s0 = inlined_call_operand.vmem [shape: f32[16,8], index: 0, kind: input, shape index: {}]
  %s1 = inlined_call_operand.vmem [shape: f32[16,8], index: 1, kind: input, shape index: {}]
  %s2 = inlined_call_operand.vmem [shape: f32[2,16,16], index: 2, kind: input, shape index: {}]
  %s3 = inlined_call_operand.vmem [shape: bf16[8,64], index: 3, kind: input, shape index: {}]
  %s4 = inlined_call_operand.vmem [shape: bf16[8,8], index: 4, kind: input, shape index: {}]
  %s5 = inlined_call_operand.vmem [shape: bf16[8,8], index: 5, kind: input, shape index: {}]
  %s6 = inlined_call_operand.vmem [shape: f32[1,128], index: 6, kind: input, shape index: {}]
  %s7 = inlined_call_operand.hbm [shape: f32[16,128], index: 7, kind: output, shape index: {}]
  %s8 = sld [smem:[#allocation0]]
  $region99: #{tpu_custom_call.1} parent=0
    _
  %s10 = ssub.s32 1, %s8
  %s11 = scalar_select 0, %s10, %s8
  $region1: #{tpu_custom_call.1} parent=0
    #allocation3 [shape = 'u8[16384]{0}', space=vmem, size = 0x4000, scoped, tag = 'input window, operand 2']
    #allocation4 [shape = 'u8[8192]{0}', space=vmem, size = 0x2000, scoped, tag = 'output window, operand 0']
    #allocation5 [shape = 's32[2]{0}', space=sflag, size = 0x8, scoped, tag = 'scoped memory for tpu_custom_call.1']
    %12 = vsyncpa [#allocation5], 0
    %s13 = scalar_lea.sflag [#allocation5], 1
    %14 = vsyncpa %s13, 0
    loop: start=0, step=1, limit=4
    $region2: #{tpu_custom_call.1} parent=1 // loop_pre_header
      _
    $region3: #{tpu_custom_call.1} parent=1 // loop_header
      %s16 = sphi 0, %s20
      %p17 = scmp.ge.s32.totalorder %s16, 4
      %s24 = sphi 0, %s24
      %s26 = sphi 0, %s24
      %s27 = sphi 0, %s26
      %s41 = sphi 0, %s27
      %s47 = sphi 0, %s49
      %s50 = sphi 0, %s47
      %s51 = sphi 0, %s50
      %s67 = sphi 0, %s51
      %s73 = sphi 0, %s75
      %s76 = sphi 0, %s73
      %s77 = sphi 0, %s76
      %s93 = sphi 0, %s77
      %s97 = sphi 0, %s97
      %s99 = sphi 0, %s97
      %s100 = sphi 0, %s99
      %s114 = sphi 0, %s100
      %s118 = sphi 0, %s118
      %s120 = sphi 0, %s118
      %s121 = sphi 0, %s120
      %s135 = sphi 0, %s121
      %s139 = sphi 0, %s139
      %s141 = sphi 0, %s139
      %s142 = sphi 0, %s141
      %s156 = sphi 0, %s142
      %s160 = sphi 0, %s160
      %s162 = sphi 0, %s160
      %s163 = sphi 0, %s162
      %s177 = sphi 0, %s163
      %s183 = sphi 0, %s185
      %s186 = sphi 0, %s183
      %s187 = sphi 0, %s186
      %s203 = sphi 0, %s187
    $region4: #{tpu_custom_call.1} parent=1 // loop_header_branch
      %19 = sbr.rel (%p17) target = $region8
    $region5: #{tpu_custom_call.1} parent=1 // loop_body
      %s21 = ssub.s32 %s16, 1
      %s22 = ssub.s32 %s16, 2
      %s23 = sadd.s32 %s16, 1
      %s25 = sadd.s32 %s24, 1
      %p28 = scmp.eq.s32.totalorder %s16, 1
      %p29 = scmp.ne.s32.totalorder %s24, %s26
      %p30 = scmp.eq.s32.totalorder %s16, 0
      %p31 = por %p29, %p30
      %p32 = scmp.ne.s32.totalorder %s24, %s26
      %p33 = scmp.eq.s32.totalorder %s21, 1
      %p34 = por %p32, %p33
      %p35 = scmp.ne.s32.totalorder %s26, %s27
      %p36 = scmp.eq.s32.totalorder %s21, 0
      %p37 = por %p35, %p36
      %p38 = scmp.ne.s32.totalorder %s26, %s27
      %p39 = scmp.eq.s32.totalorder %s22, 1
      %p40 = por %p38, %p39
      %p42 = scmp.ne.s32.totalorder %s27, %s41
      %p43 = scmp.eq.s32.totalorder %s22, 0
      %p44 = por %p42, %p43
      %s45 = ssub.s32 %s16, %s23
      %p46 = scmp.eq.s32.totalorder %s45, 0
      %s48 = sadd.s32 %s47, 1
      %s49 = scalar_select %p46, %s47, %s48
      %p52 = pneg %p46
      %p53 = scmp.eq.s32.totalorder %s16, 1
      %p54 = por %p52, %p53
      %p55 = scmp.ne.s32.totalorder %s47, %s50
      %p56 = scmp.eq.s32.totalorder %s16, 0
      %p57 = por %p55, %p56
      %p58 = scmp.ne.s32.totalorder %s47, %s50
      %p59 = scmp.eq.s32.totalorder %s21, 1
      %p60 = por %p58, %p59
      %p61 = scmp.ne.s32.totalorder %s50, %s51
      %p62 = scmp.eq.s32.totalorder %s21, 0
      %p63 = por %p61, %p62
      %p64 = scmp.ne.s32.totalorder %s50, %s51
      %p65 = scmp.eq.s32.totalorder %s22, 1
      %p66 = por %p64, %p65
      %p68 = scmp.ne.s32.totalorder %s51, %s67
      %p69 = scmp.eq.s32.totalorder %s22, 0
      %p70 = por %p68, %p69
      %s71 = ssub.s32 %s16, %s23
      %p72 = scmp.eq.s32.totalorder %s71, 0
      %s74 = sadd.s32 %s73, 1
      %s75 = scalar_select %p72, %s73, %s74
      %p78 = pneg %p72
      %p79 = scmp.eq.s32.totalorder %s16, 1
      %p80 = por %p78, %p79
      %p81 = scmp.ne.s32.totalorder %s73, %s76
      %p82 = scmp.eq.s32.totalorder %s16, 0
      %p83 = por %p81, %p82
      %p84 = scmp.ne.s32.totalorder %s73, %s76
      %p85 = scmp.eq.s32.totalorder %s21, 1
      %p86 = por %p84, %p85
      %p87 = scmp.ne.s32.totalorder %s76, %s77
      %p88 = scmp.eq.s32.totalorder %s21, 0
      %p89 = por %p87, %p88
      %p90 = scmp.ne.s32.totalorder %s76, %s77
      %p91 = scmp.eq.s32.totalorder %s22, 1
      %p92 = por %p90, %p91
      %p94 = scmp.ne.s32.totalorder %s77, %s93
      %p95 = scmp.eq.s32.totalorder %s22, 0
      %p96 = por %p94, %p95
      %s98 = sadd.s32 %s97, 1
      %p101 = scmp.eq.s32.totalorder %s16, 1
      %p102 = scmp.ne.s32.totalorder %s97, %s99
      %p103 = scmp.eq.s32.totalorder %s16, 0
      %p104 = por %p102, %p103
      %p105 = scmp.ne.s32.totalorder %s97, %s99
      %p106 = scmp.eq.s32.totalorder %s21, 1
      %p107 = por %p105, %p106
      %p108 = scmp.ne.s32.totalorder %s99, %s100
      %p109 = scmp.eq.s32.totalorder %s21, 0
      %p110 = por %p108, %p109
      %p111 = scmp.ne.s32.totalorder %s99, %s100
      %p112 = scmp.eq.s32.totalorder %s22, 1
      %p113 = por %p111, %p112
      %p115 = scmp.ne.s32.totalorder %s100, %s114
      %p116 = scmp.eq.s32.totalorder %s22, 0
      %p117 = por %p115, %p116
      %s119 = sadd.s32 %s118, 1
      %p122 = scmp.eq.s32.totalorder %s16, 1
      %p123 = scmp.ne.s32.totalorder %s118, %s120
      %p124 = scmp.eq.s32.totalorder %s16, 0
      %p125 = por %p123, %p124
      %p126 = scmp.ne.s32.totalorder %s118, %s120
      %p127 = scmp.eq.s32.totalorder %s21, 1
      %p128 = por %p126, %p127
      %p129 = scmp.ne.s32.totalorder %s120, %s121
      %p130 = scmp.eq.s32.totalorder %s21, 0
      %p131 = por %p129, %p130
      %p132 = scmp.ne.s32.totalorder %s120, %s121
      %p133 = scmp.eq.s32.totalorder %s22, 1
      %p134 = por %p132, %p133
      %p136 = scmp.ne.s32.totalorder %s121, %s135
      %p137 = scmp.eq.s32.totalorder %s22, 0
      %p138 = por %p136, %p137
      %s140 = sadd.s32 %s139, 1
      %p143 = scmp.eq.s32.totalorder %s16, 1
      %p144 = scmp.ne.s32.totalorder %s139, %s141
      %p145 = scmp.eq.s32.totalorder %s16, 0
      %p146 = por %p144, %p145
      %p147 = scmp.ne.s32.totalorder %s139, %s141
      %p148 = scmp.eq.s32.totalorder %s21, 1
      %p149 = por %p147, %p148
      %p150 = scmp.ne.s32.totalorder %s141, %s142
      %p151 = scmp.eq.s32.totalorder %s21, 0
      %p152 = por %p150, %p151
      %p153 = scmp.ne.s32.totalorder %s141, %s142
      %p154 = scmp.eq.s32.totalorder %s22, 1
      %p155 = por %p153, %p154
      %p157 = scmp.ne.s32.totalorder %s142, %s156
      %p158 = scmp.eq.s32.totalorder %s22, 0
      %p159 = por %p157, %p158
      %s161 = sadd.s32 %s160, 1
      %p164 = scmp.eq.s32.totalorder %s16, 1
      %p165 = scmp.ne.s32.totalorder %s160, %s162
      %p166 = scmp.eq.s32.totalorder %s16, 0
      %p167 = por %p165, %p166
      %p168 = scmp.ne.s32.totalorder %s160, %s162
      %p169 = scmp.eq.s32.totalorder %s21, 1
      %p170 = por %p168, %p169
      %p171 = scmp.ne.s32.totalorder %s162, %s163
      %p172 = scmp.eq.s32.totalorder %s21, 0
      %p173 = por %p171, %p172
      %p174 = scmp.ne.s32.totalorder %s162, %s163
      %p175 = scmp.eq.s32.totalorder %s22, 1
      %p176 = por %p174, %p175
      %p178 = scmp.ne.s32.totalorder %s163, %s177
      %p179 = scmp.eq.s32.totalorder %s22, 0
      %p180 = por %p178, %p179
      %s181 = ssub.s32 %s16, %s23
      %p182 = scmp.eq.s32.totalorder %s181, 0
      %s184 = sadd.s32 %s183, 1
      %s185 = scalar_select %p182, %s183, %s184
      %p188 = pneg %p182
      %p189 = scmp.eq.s32.totalorder %s16, 1
      %p190 = por %p188, %p189
      %p191 = scmp.ne.s32.totalorder %s183, %s186
      %p192 = scmp.eq.s32.totalorder %s16, 0
      %p193 = por %p191, %p192
      %p194 = scmp.ne.s32.totalorder %s183, %s186
      %p195 = scmp.eq.s32.totalorder %s21, 1
      %p196 = por %p194, %p195
      %p197 = scmp.ne.s32.totalorder %s186, %s187
      %p198 = scmp.eq.s32.totalorder %s21, 0
      %p199 = por %p197, %p198
      %p200 = scmp.ne.s32.totalorder %s186, %s187
      %p201 = scmp.eq.s32.totalorder %s22, 1
      %p202 = por %p200, %p201
      %p204 = scmp.ne.s32.totalorder %s187, %s203
      %p205 = scmp.eq.s32.totalorder %s22, 0
      %p206 = por %p204, %p205
      %p207 = scmp.le.s32.totalorder 1, %s16
      %p208 = scmp.lt.s32.totalorder %s16, 3
      %p209 = pnand %p207, %p208
      %p210 = pneg %p209
      // Predicated region
      $region9: #{tpu_custom_call.1} parent=5 // pred_check
        _
      $region10: #{tpu_custom_call.1} parent=5 // pred_check_branch
        %212 = sbr.rel (%p209) target = $region12
      $region11: #{tpu_custom_call.1} parent=5 // pred_region
        %s213 = ssub.s32 %s16, 1
        // Predicated region
        $region13: #{tpu_custom_call.1} parent=11 // pred_check
          %p214 = pneg %p37
        $region14: #{tpu_custom_call.1} parent=11 // pred_check_branch
          %216 = sbr.rel (%p214) target = $region16
        $region15: #{tpu_custom_call.1} parent=11 // pred_region
          _
        $region16: #{tpu_custom_call.1} parent=11 // pred_fallthru
          _
        // Predicated region
        $region17: #{tpu_custom_call.1} parent=11 // pred_check
          %p217 = pneg %p110
        $region18: #{tpu_custom_call.1} parent=11 // pred_check_branch
          %219 = sbr.rel (%p217) target = $region20
        $region19: #{tpu_custom_call.1} parent=11 // pred_region
          _
        $region20: #{tpu_custom_call.1} parent=11 // pred_fallthru
          _
        // Predicated region
        $region21: #{tpu_custom_call.1} parent=11 // pred_check
          %p220 = pneg %p131
        $region22: #{tpu_custom_call.1} parent=11 // pred_check_branch
          %222 = sbr.rel (%p220) target = $region24
        $region23: #{tpu_custom_call.1} parent=11 // pred_region
          _
        $region24: #{tpu_custom_call.1} parent=11 // pred_fallthru
          _
        // Predicated region
        $region25: #{tpu_custom_call.1} parent=11 // pred_check
          %p223 = pneg %p152
        $region26: #{tpu_custom_call.1} parent=11 // pred_check_branch
          %225 = sbr.rel (%p223) target = $region28
        $region27: #{tpu_custom_call.1} parent=11 // pred_region
          _
        $region28: #{tpu_custom_call.1} parent=11 // pred_fallthru
          _
        // Predicated region
        $region29: #{tpu_custom_call.1} parent=11 // pred_check
          %p226 = pneg %p173
        $region30: #{tpu_custom_call.1} parent=11 // pred_check_branch
          %228 = sbr.rel (%p226) target = $region32
        $region31: #{tpu_custom_call.1} parent=11 // pred_region
          _
        $region32: #{tpu_custom_call.1} parent=11 // pred_fallthru
          _
      $region12: #{tpu_custom_call.1} parent=5 // pred_fallthru
        _
      %p229 = scmp.lt.s32.totalorder %s16, 2
      // Predicated region
      $region33: #{tpu_custom_call.1} parent=5 // pred_check
        %p230 = pneg %p229
      $region34: #{tpu_custom_call.1} parent=5 // pred_check_branch
        %232 = sbr.rel (%p230) target = $region36
      $region35: #{tpu_custom_call.1} parent=5 // pred_region
        // Predicated region
        $region37: #{tpu_custom_call.1} parent=35 // pred_check
          %p233 = pneg %p57
        $region38: #{tpu_custom_call.1} parent=35 // pred_check_branch
          %235 = sbr.rel (%p233) target = $region40
        $region39: #{tpu_custom_call.1} parent=35 // pred_region
          %p236 = scmp.lt.s32.totalorder %s16, 1
          %s237 = scalar_select %p236, %s16, 1
          %s238 = smul.addr %s237, 8
          %s239 = scalar_lea.vmem %s1, %s238
        $region40: #{tpu_custom_call.1} parent=35 // pred_fallthru
          _
        // Predicated region
        $region41: #{tpu_custom_call.1} parent=35 // pred_check
          %p240 = pneg %p83
        $region42: #{tpu_custom_call.1} parent=35 // pred_check_branch
          %242 = sbr.rel (%p240) target = $region44
        $region43: #{tpu_custom_call.1} parent=35 // pred_region
          %s243 = sand.u32 %s73, 1
          %s244 = sand.u32 %s73, 1
          %s245 = smul.addr %s244, 16
          %s246 = scalar_lea.vmem [#allocation3], %s245
          %s247 = smul.addr %s16, 8
          %s248 = scalar_lea.vmem %s2, %s247
          // Predicated region
          $region45: #{tpu_custom_call.1} parent=43 // pred_check
            _
          $region46: #{tpu_custom_call.1} parent=43 // pred_check_branch
            %250 = sbr.rel (0) target = $region48
          $region47: #{tpu_custom_call.1} parent=43 // pred_region
            // Predicated region
            $region49: #{tpu_custom_call.1} parent=47 // pred_check
              _
            $region50: #{tpu_custom_call.1} parent=47 // pred_check_branch
              %252 = sbr.rel (0) target = $region52
            $region51: #{tpu_custom_call.1} parent=47 // pred_region
              // Predicated region
              $region64: #{tpu_custom_call.1} parent=51 // pred_check
                _
              $region65: #{tpu_custom_call.1} parent=51 // pred_check_branch
                %270 = sbr.rel (0) target = $region67
              $region66: #{tpu_custom_call.1} parent=51 // pred_region
                loop: start=0, step=1, limit=1
                $region68: #{tpu_custom_call.1} parent=66 // loop_pre_header
                  _
                $region69: #{tpu_custom_call.1} parent=66 // loop_header
                  %s272 = sphi 0, %s276
                  %p273 = scmp.ge.s32.totalorder %s272, 1
                  %s277 = sphi %s248, %s248
                  %s278 = sphi %s246, %s246
                $region70: #{tpu_custom_call.1} parent=66 // loop_header_branch
                  %275 = sbr.rel (%p273) target = $region74
                $region71: #{tpu_custom_call.1} parent=66 // loop_body
                  %v279 = vld [vmem:[%s277] sm:$0xff]
                  %280 = vst [vmem:[%s278] sm:$0xff] %v279
                  %v281 = vld [vmem:[%s277 + $0x10] sm:$0xff]
                  %282 = vst [vmem:[%s278 + $0x8] sm:$0xff] %v281
                $region72: #{tpu_custom_call.1} parent=66 // loop_footer
                  %s276 = sadd.s32 1, %s272
                $region73: #{tpu_custom_call.1} parent=66 // loop_footer_branch
                  %271 = sbr.rel target = $region69
                $region74: #{tpu_custom_call.1} parent=66 // loop_exit
                  _
              $region67: #{tpu_custom_call.1} parent=51 // pred_fallthru
                _
              // Predicated region
              $region75: #{tpu_custom_call.1} parent=51 // pred_check
                _
              $region76: #{tpu_custom_call.1} parent=51 // pred_check_branch
                %284 = sbr.rel target = $region78
              $region77: #{tpu_custom_call.1} parent=51 // pred_region
                _
              $region78: #{tpu_custom_call.1} parent=51 // pred_fallthru
                _
            $region52: #{tpu_custom_call.1} parent=47 // pred_fallthru
              _
            // Predicated region
            $region53: #{tpu_custom_call.1} parent=47 // pred_check
              _
            $region54: #{tpu_custom_call.1} parent=47 // pred_check_branch
              %254 = sbr.rel target = $region56
            $region55: #{tpu_custom_call.1} parent=47 // pred_region
              %s256 = ssub.s32 256, 1
              loop: start=0, step=1, limit=1
              $region57: #{tpu_custom_call.1} parent=55 // loop_pre_header
                _
              $region58: #{tpu_custom_call.1} parent=55 // loop_header
                %s258 = sphi 0, %s262
                %p259 = scmp.ge.s32.totalorder %s258, 1
                %s263 = sphi %s248, %s248
                %s264 = sphi %s246, %s246
              $region59: #{tpu_custom_call.1} parent=55 // loop_header_branch
                %261 = sbr.rel (%p259) target = $region63
              $region60: #{tpu_custom_call.1} parent=55 // loop_body
                %v265 = vld [vmem:[%s263] sm:%s256]
                %266 = vst [vmem:[%s264] sm:%s256] %v265
                %v267 = vld [vmem:[%s263 + $0x10] sm:%s256]
                %268 = vst [vmem:[%s264 + $0x8] sm:%s256] %v267
              $region61: #{tpu_custom_call.1} parent=55 // loop_footer
                %s262 = sadd.s32 1, %s258
              $region62: #{tpu_custom_call.1} parent=55 // loop_footer_branch
                %257 = sbr.rel target = $region58
              $region63: #{tpu_custom_call.1} parent=55 // loop_exit
                _
            $region56: #{tpu_custom_call.1} parent=47 // pred_fallthru
              _
          $region48: #{tpu_custom_call.1} parent=43 // pred_fallthru
            _
          %285 = vnop
        $region44: #{tpu_custom_call.1} parent=35 // pred_fallthru
          _
      $region36: #{tpu_custom_call.1} parent=5 // pred_fallthru
        _
      %p286 = scmp.le.s32.totalorder 1, %s16
      %p287 = scmp.lt.s32.totalorder %s16, 3
      %p288 = pnand %p286, %p287
      %p289 = pneg %p288
      // Predicated region
      $region79: #{tpu_custom_call.1} parent=5 // pred_check
        _
      $region80: #{tpu_custom_call.1} parent=5 // pred_check_branch
        %291 = sbr.rel (%p288) target = $region82
      $region81: #{tpu_custom_call.1} parent=5 // pred_region
        %s292 = ssub.s32 %s16, 1
        %s293 = sand.u32 %s76, 1
        %s294 = sand.u32 %s76, 1
        %s295 = smul.addr %s294, 16
        %s296 = scalar_lea.vmem [#allocation3], %s295
        // Predicated region
        $region83: #{tpu_custom_call.1} parent=81 // pred_check
          %p297 = pneg %p89
        $region84: #{tpu_custom_call.1} parent=81 // pred_check_branch
          %299 = sbr.rel (%p297) target = $region86
        $region85: #{tpu_custom_call.1} parent=81 // pred_region
          _
        $region86: #{tpu_custom_call.1} parent=81 // pred_fallthru
          _
        %p300 = pneg %p37
        %p301 = pneg %p34
        %p302 = scmp.lt.s32.totalorder %s21, 1
        %s303 = scalar_select %p302, %s21, 1
        %s304 = smul.addr %s303, 8
        %s305 = scalar_lea.vmem %s1, %s304
        %p306 = pneg %p63
        %p307 = pneg %p60
        %s308 = sand.u32 %s76, 1
        %s309 = sand.u32 %s76, 1
        %s310 = smul.addr %s309, 16
        %s311 = scalar_lea.vmem [#allocation3], %s310
        %p312 = pneg %p89
        %p313 = pneg %p86
        %p314 = pneg %p110
        %p315 = pneg %p107
        %p316 = pneg %p131
        %p317 = pneg %p128
        %p318 = pneg %p152
        %p319 = pneg %p149
        %p320 = pneg %p173
        %p321 = pneg %p170
        %p322 = pneg %p199
        %p323 = pneg %p196
        %s324 = sand.u32 %s186, 1
        %s325 = scalar_lea.sflag [#allocation5], %s324
        %s326 = sand.u32 %s186, 1
        %s327 = smul.addr %s326, 8
        %s328 = scalar_lea.vmem [#allocation4], %s327
        %p329 = scmp.lt.s32.totalorder %s21, 1
        %s330 = scalar_select %p329, %s21, 1
        %s331 = smul.addr %s330, 8
        %s332 = scalar_lea.vmem %s1, %s331
        %v334 = vld [vmem:[%s0] sm:$0xff]
        %v335 = vld [vmem:[%s0 + $0x8] sm:$0xff]
        %v336 = vpack.c.bf16 %v335, %v334
        %v337 = vld [vmem:[%s332] sm:$0xff]
        %v338 = vpack.c.bf16 %v337, %v337
        %v339 = vld [vmem:[%s3] sm:$0xf]
        %vm340 = vcmask 64512
        %v342 = vsel %vm340, %v336, 0
        %vm344 = vcmask 1043456
        %v346 = vsel %vm344, %v339, 0
        %348 = vmatprep.subr.bf16.mxu0 0
        %349 = vmatpush1.bf16.msra.mxu0 0
        %350 = vmatprep.subr.bf16.mxu0 0
        %351 = vmatpush1.bf16.msra.mxu0 0
        %352 = vmatprep.subr.bf16.mxu0 0
        %353 = vmatpush1.bf16.msra.mxu0 0
        %354 = vmatprep.subr.bf16.mxu0 0
        %355 = vmatpush1.bf16.msra.mxu0 0
        %356 = vmatprep.subr.bf16.mxu0 0
        %357 = vmatpush1.bf16.msra.mxu0 0
        %358 = vmatprep.subr.bf16.mxu0 0
        %359 = vmatpush1.bf16.msra.mxu0 0
        %360 = vmatprep.subr.bf16.mxu0 0
        %361 = vmatpush1.bf16.msra.mxu0 0
        %362 = vmatprep.subr.bf16.mxu0 0
        %363 = vmatpush1.bf16.msra.mxu0 %v346
        %364 = vmatprep.subr.bf16.mxu0 0
        %365 = vmatpush2.bf16.msra.mxu0 0
        %366 = vmatprep.subr.bf16.mxu0 0
        %367 = vmatpush2.bf16.msra.mxu0 0
        %368 = vmatprep.subr.bf16.mxu0 0
        %369 = vmatpush2.bf16.msra.mxu0 0
        %370 = vmatprep.subr.bf16.mxu0 0
        %371 = vmatpush2.bf16.msra.mxu0 0
        %372 = vmatprep.subr.bf16.mxu0 0
        %373 = vmatpush2.bf16.msra.mxu0 0
        %374 = vmatprep.subr.bf16.mxu0 0
        %375 = vmatpush2.bf16.msra.mxu0 0
        %376 = vmatprep.subr.bf16.mxu0 0
        %377 = vmatpush2.bf16.msra.mxu0 0
        %378 = vmatprep.subr.bf16.mxu0 0
        %379 = vmatpush2.bf16.msra.mxu0 0
        %380 = vmatprep.mubr.bf16.mxu0 0
        %381 = vmatmul.mubr.bf16.gmra.mxu0 %v342
        %v382 = vpop.f32.mrf.mxu0
        %v383 = vadd.f32 0.0, %v382
        %v384 = vpop.f32.mrf.mxu0
        %v385 = vpop.f32.mrf.mxu0
        %v386 = vadd.f32 0.0, %v385
        %v387 = vpop.f32.mrf.mxu0
        %388 = vdwg.mxu0
        %v389 = vpack.c.bf16 %v386, %v383
        %v390 = vld [vmem:[%s4] sm:$0xf]
        %v392 = vsel %vm340, %v338, 0
        %v395 = vsel %vm344, %v390, 0
        %397 = vmatprep.subr.bf16.mxu0 0
        %398 = vmatpush1.bf16.msra.mxu0 0
        %399 = vmatprep.subr.bf16.mxu0 0
        %400 = vmatpush1.bf16.msra.mxu0 0
        %401 = vmatprep.subr.bf16.mxu0 0
        %402 = vmatpush1.bf16.msra.mxu0 0
        %403 = vmatprep.subr.bf16.mxu0 0
        %404 = vmatpush1.bf16.msra.mxu0 0
        %405 = vmatprep.subr.bf16.mxu0 0
        %406 = vmatpush1.bf16.msra.mxu0 0
        %407 = vmatprep.subr.bf16.mxu0 0
        %408 = vmatpush1.bf16.msra.mxu0 0
        %409 = vmatprep.subr.bf16.mxu0 0
        %410 = vmatpush1.bf16.msra.mxu0 0
        %411 = vmatprep.subr.bf16.mxu0 0
        %412 = vmatpush1.bf16.msra.mxu0 %v395
        %413 = vmatprep.subr.bf16.mxu0 0
        %414 = vmatpush2.bf16.msra.mxu0 0
        %415 = vmatprep.subr.bf16.mxu0 0
        %416 = vmatpush2.bf16.msra.mxu0 0
        %417 = vmatprep.subr.bf16.mxu0 0
        %418 = vmatpush2.bf16.msra.mxu0 0
        %419 = vmatprep.subr.bf16.mxu0 0
        %420 = vmatpush2.bf16.msra.mxu0 0
        %421 = vmatprep.subr.bf16.mxu0 0
        %422 = vmatpush2.bf16.msra.mxu0 0
        %423 = vmatprep.subr.bf16.mxu0 0
        %424 = vmatpush2.bf16.msra.mxu0 0
        %425 = vmatprep.subr.bf16.mxu0 0
        %426 = vmatpush2.bf16.msra.mxu0 0
        %427 = vmatprep.subr.bf16.mxu0 0
        %428 = vmatpush2.bf16.msra.mxu0 0
        %429 = vmatprep.mubr.bf16.mxu0 0
        %430 = vmatmul.mubr.bf16.gmra.mxu0 %v392
        %v431 = vpop.f32.mrf.mxu0
        %v432 = vadd.f32 0.0, %v431
        %v433 = vpop.f32.mrf.mxu0
        %v434 = vpop.f32.mrf.mxu0
        %v435 = vpop.f32.mrf.mxu0
        %436 = vdwg.mxu0
        %v437 = vld [vmem:[%s5] sm:$0xf]
        %v439 = vsel %vm340, %v437, 0
        %441 = vmatprep.subr.bf16.mxu0 0
        %442 = vmatpush1.bf16.xpose.msra.mxu0 0
        %443 = vmatprep.subr.bf16.mxu0 0
        %444 = vmatpush1.bf16.xpose.msra.mxu0 0
        %445 = vmatprep.subr.bf16.mxu0 0
        %446 = vmatpush1.bf16.xpose.msra.mxu0 0
        %447 = vmatprep.subr.bf16.mxu0 0
        %448 = vmatpush1.bf16.xpose.msra.mxu0 0
        %449 = vmatprep.subr.bf16.mxu0 0
        %450 = vmatpush1.bf16.xpose.msra.mxu0 0
        %451 = vmatprep.subr.bf16.mxu0 0
        %452 = vmatpush1.bf16.xpose.msra.mxu0 0
        %453 = vmatprep.subr.bf16.mxu0 0
        %454 = vmatpush1.bf16.xpose.msra.mxu0 0
        %455 = vmatprep.subr.bf16.mxu0 0
        %456 = vmatpush1.bf16.xpose.msra.mxu0 %v342
        %457 = vmatprep.subr.bf16.mxu0 0
        %458 = vmatpush2.bf16.xpose.msra.mxu0 0
        %459 = vmatprep.subr.bf16.mxu0 0
        %460 = vmatpush2.bf16.xpose.msra.mxu0 0
        %461 = vmatprep.subr.bf16.mxu0 0
        %462 = vmatpush2.bf16.xpose.msra.mxu0 0
        %463 = vmatprep.subr.bf16.mxu0 0
        %464 = vmatpush2.bf16.xpose.msra.mxu0 0
        %465 = vmatprep.subr.bf16.mxu0 0
        %466 = vmatpush2.bf16.xpose.msra.mxu0 0
        %467 = vmatprep.subr.bf16.mxu0 0
        %468 = vmatpush2.bf16.xpose.msra.mxu0 0
        %469 = vmatprep.subr.bf16.mxu0 0
        %470 = vmatpush2.bf16.xpose.msra.mxu0 0
        %471 = vmatprep.subr.bf16.mxu0 0
        %472 = vmatpush2.bf16.xpose.msra.mxu0 0
        %473 = vmatprep.mubr.bf16.mxu0 0
        %474 = vmatmul.mubr.bf16.gmra.mxu0 %v439
        %v475 = vpop.f32.mrf.mxu0
        %v476 = vadd.f32 0.0, %v475
        %v477 = vpop.f32.mrf.mxu0
        %v478 = vpop.f32.mrf.mxu0
        %v479 = vpop.f32.mrf.mxu0
        %480 = vdwg.mxu0
        %481 = vst [vmem:[#allocation2] sm:$0xff] 0.0
        %v482 = vld [vmem:[%s296] sm:$0xff]
        %484 = vset.pattern.permute.xlu0 0
        %485 = vperm.xlu0 %484, %v432
        %v486 = vpop.permute.xlu0 %485
        %v488 = vlaneseq
        %v489 = vshrl.u32 %v488, 7
        %v490 = vsub.s32 0, %v489
        %v491 = vrot.slane %v476, %v490
        %v492 = vadd.f32 %v486, %v491
        %vm493 = vcmp.ge.f32.partialorder %v492, 0.0
        %v494 = vmul.f32 %v492, 0.2
        %v495 = vsel %vm493, %v492, %v494
        %v496 = vadd.f32 %v495, %v482
        %vm497 = vcmask 130048
        %v498 = vsel %vm497, %v496, -inf
        %499 = vmax.xlane.f32.xlu0 %v498
        %v500 = vpop.xlane.xlu0 %499
        %v501 = vsub.f32 %v496, %v500
        %v502 = vmul.f32 %v501, 1.442695
        %v503 = vpow.pop %v502
        %v504 = vsel %vm497, %v503, 0.0
        %505 = vadd.xlane.f32.xlu0 %v504
        %v506 = vpop.xlane.xlu0 %505
        %v507 = vrcp.pop %v506
        %v508 = vmul.f32 %v503, %v507
        %v509 = vpack.c.bf16 %v508, %v508
        %v511 = vsel %vm497, %v509, 0
        %513 = vmatprep.subr.bf16.mxu0 0
        %514 = vmatpush1.bf16.msra.mxu0 0
        %515 = vmatprep.subr.bf16.mxu0 0
        %516 = vmatpush1.bf16.msra.mxu0 0
        %517 = vmatprep.subr.bf16.mxu0 0
        %518 = vmatpush1.bf16.msra.mxu0 0
        %519 = vmatprep.subr.bf16.mxu0 0
        %520 = vmatpush1.bf16.msra.mxu0 0
        %521 = vmatprep.subr.bf16.mxu0 0
        %522 = vmatpush1.bf16.msra.mxu0 0
        %523 = vmatprep.subr.bf16.mxu0 0
        %524 = vmatpush1.bf16.msra.mxu0 0
        %525 = vmatprep.subr.bf16.mxu0 0
        %526 = vmatpush1.bf16.msra.mxu0 0
        %527 = vmatprep.subr.bf16.mxu0 0
        %528 = vmatpush1.bf16.msra.mxu0 %v389
        %529 = vmatprep.subr.bf16.mxu0 0
        %530 = vmatpush2.bf16.msra.mxu0 0
        %531 = vmatprep.subr.bf16.mxu0 0
        %532 = vmatpush2.bf16.msra.mxu0 0
        %533 = vmatprep.subr.bf16.mxu0 0
        %534 = vmatpush2.bf16.msra.mxu0 0
        %535 = vmatprep.subr.bf16.mxu0 0
        %536 = vmatpush2.bf16.msra.mxu0 0
        %537 = vmatprep.subr.bf16.mxu0 0
        %538 = vmatpush2.bf16.msra.mxu0 0
        %539 = vmatprep.subr.bf16.mxu0 0
        %540 = vmatpush2.bf16.msra.mxu0 0
        %541 = vmatprep.subr.bf16.mxu0 0
        %542 = vmatpush2.bf16.msra.mxu0 0
        %543 = vmatprep.subr.bf16.mxu0 0
        %544 = vmatpush2.bf16.msra.mxu0 0
        %545 = vmatprep.mubr.bf16.mxu0 0
        %546 = vmatmul.mubr.bf16.gmra.mxu0 %v511
        %v547 = vpop.f32.mrf.mxu0
        %v548 = vadd.f32 0.0, %v547
        %v549 = vpop.f32.mrf.mxu0
        %v550 = vpop.f32.mrf.mxu0
        %v551 = vpop.f32.mrf.mxu0
        %552 = vdwg.mxu0
        %v553 = vld [vmem:[#allocation2] sm:$0xff]
        %v554 = vmul.f32 %v548, 0.7
        %v555 = vadd.f32 %v553, %v554
        %556 = vst.msk [vmem:[#allocation2] sm:$0xff] %vm340, %v555
        %557 = vset.pattern.permute.xlu0 1
        %558 = vperm.xlu0 %557, %v432
        %v559 = vpop.permute.xlu0 %558
        %v561 = vlaneseq
        %v562 = vshrl.u32 %v561, 7
        %v563 = vsub.s32 1, %v562
        %v564 = vrot.slane %v476, %v563
        %v565 = vadd.f32 %v559, %v564
        %vm566 = vcmp.ge.f32.partialorder %v565, 0.0
        %v567 = vmul.f32 %v565, 0.2
        %v568 = vsel %vm566, %v565, %v567
        %v569 = vadd.f32 %v568, %v482
        %v570 = vsel %vm497, %v569, -inf
        %571 = vmax.xlane.f32.xlu0 %v570
        %v572 = vpop.xlane.xlu0 %571
        %v573 = vsub.f32 %v569, %v572
        %v574 = vmul.f32 %v573, 1.442695
        %v575 = vpow.pop %v574
        %v576 = vsel %vm497, %v575, 0.0
        %577 = vadd.xlane.f32.xlu0 %v576
        %v578 = vpop.xlane.xlu0 %577
        %v579 = vrcp.pop %v578
        %v580 = vmul.f32 %v575, %v579
        %v581 = vpack.c.bf16 %v580, %v580
        %583 = vrot.lane.b32.xlu0 %v389, 120
        %v584 = vpop.permute.xlu0 %583
        %v587 = vsel %vm497, %v581, 0
        %589 = vmatprep.subr.bf16.mxu0 0
        %590 = vmatpush1.bf16.msra.mxu0 0
        %591 = vmatprep.subr.bf16.mxu0 0
        %592 = vmatpush1.bf16.msra.mxu0 0
        %593 = vmatprep.subr.bf16.mxu0 0
        %594 = vmatpush1.bf16.msra.mxu0 0
        %595 = vmatprep.subr.bf16.mxu0 0
        %596 = vmatpush1.bf16.msra.mxu0 0
        %597 = vmatprep.subr.bf16.mxu0 0
        %598 = vmatpush1.bf16.msra.mxu0 0
        %599 = vmatprep.subr.bf16.mxu0 0
        %600 = vmatpush1.bf16.msra.mxu0 0
        %601 = vmatprep.subr.bf16.mxu0 0
        %602 = vmatpush1.bf16.msra.mxu0 0
        %603 = vmatprep.subr.bf16.mxu0 0
        %604 = vmatpush1.bf16.msra.mxu0 %v584
        %605 = vmatprep.subr.bf16.mxu0 0
        %606 = vmatpush2.bf16.msra.mxu0 0
        %607 = vmatprep.subr.bf16.mxu0 0
        %608 = vmatpush2.bf16.msra.mxu0 0
        %609 = vmatprep.subr.bf16.mxu0 0
        %610 = vmatpush2.bf16.msra.mxu0 0
        %611 = vmatprep.subr.bf16.mxu0 0
        %612 = vmatpush2.bf16.msra.mxu0 0
        %613 = vmatprep.subr.bf16.mxu0 0
        %614 = vmatpush2.bf16.msra.mxu0 0
        %615 = vmatprep.subr.bf16.mxu0 0
        %616 = vmatpush2.bf16.msra.mxu0 0
        %617 = vmatprep.subr.bf16.mxu0 0
        %618 = vmatpush2.bf16.msra.mxu0 0
        %619 = vmatprep.subr.bf16.mxu0 0
        %620 = vmatpush2.bf16.msra.mxu0 0
        %621 = vmatprep.mubr.bf16.mxu0 0
        %622 = vmatmul.mubr.bf16.gmra.mxu0 %v587
        %v623 = vpop.f32.mrf.mxu0
        %v624 = vadd.f32 0.0, %v623
        %v625 = vpop.f32.mrf.mxu0
        %v626 = vpop.f32.mrf.mxu0
        %v627 = vpop.f32.mrf.mxu0
        %628 = vdwg.mxu0
        %v629 = vld [vmem:[#allocation2] sm:$0xff]
        %v630 = vmul.f32 %v624, 0.7
        %632 = vrot.lane.b32.xlu0 %v630, 8
        %v633 = vpop.permute.xlu0 %632
        %v635 = vadd.f32 %v629, %v633
        %vm636 = vcmask 130112
        %637 = vst.msk [vmem:[#allocation2] sm:$0xff] %vm636, %v635
        %638 = vset.pattern.permute.xlu0 2
        %639 = vperm.xlu0 %638, %v432
        %v640 = vpop.permute.xlu0 %639
        %v642 = vlaneseq
        %v643 = vshrl.u32 %v642, 7
        %v644 = vsub.s32 2, %v643
        %v645 = vrot.slane %v476, %v644
        %v646 = vadd.f32 %v640, %v645
        %vm647 = vcmp.ge.f32.partialorder %v646, 0.0
        %v648 = vmul.f32 %v646, 0.2
        %v649 = vsel %vm647, %v646, %v648
        %v650 = vadd.f32 %v649, %v482
        %v651 = vsel %vm497, %v650, -inf
        %652 = vmax.xlane.f32.xlu0 %v651
        %v653 = vpop.xlane.xlu0 %652
        %v654 = vsub.f32 %v650, %v653
        %v655 = vmul.f32 %v654, 1.442695
        %v656 = vpow.pop %v655
        %v657 = vsel %vm497, %v656, 0.0
        %658 = vadd.xlane.f32.xlu0 %v657
        %v659 = vpop.xlane.xlu0 %658
        %v660 = vrcp.pop %v659
        %v661 = vmul.f32 %v656, %v660
        %v662 = vpack.c.bf16 %v661, %v661
        %663 = vrot.lane.b32.xlu0 %v389, 112
        %v664 = vpop.permute.xlu0 %663
        %v667 = vsel %vm497, %v662, 0
        %669 = vmatprep.subr.bf16.mxu0 0
        %670 = vmatpush1.bf16.msra.mxu0 0
        %671 = vmatprep.subr.bf16.mxu0 0
        %672 = vmatpush1.bf16.msra.mxu0 0
        %673 = vmatprep.subr.bf16.mxu0 0
        %674 = vmatpush1.bf16.msra.mxu0 0
        %675 = vmatprep.subr.bf16.mxu0 0
        %676 = vmatpush1.bf16.msra.mxu0 0
        %677 = vmatprep.subr.bf16.mxu0 0
        %678 = vmatpush1.bf16.msra.mxu0 0
        %679 = vmatprep.subr.bf16.mxu0 0
        %680 = vmatpush1.bf16.msra.mxu0 0
        %681 = vmatprep.subr.bf16.mxu0 0
        %682 = vmatpush1.bf16.msra.mxu0 0
        %683 = vmatprep.subr.bf16.mxu0 0
        %684 = vmatpush1.bf16.msra.mxu0 %v664
        %685 = vmatprep.subr.bf16.mxu0 0
        %686 = vmatpush2.bf16.msra.mxu0 0
        %687 = vmatprep.subr.bf16.mxu0 0
        %688 = vmatpush2.bf16.msra.mxu0 0
        %689 = vmatprep.subr.bf16.mxu0 0
        %690 = vmatpush2.bf16.msra.mxu0 0
        %691 = vmatprep.subr.bf16.mxu0 0
        %692 = vmatpush2.bf16.msra.mxu0 0
        %693 = vmatprep.subr.bf16.mxu0 0
        %694 = vmatpush2.bf16.msra.mxu0 0
        %695 = vmatprep.subr.bf16.mxu0 0
        %696 = vmatpush2.bf16.msra.mxu0 0
        %697 = vmatprep.subr.bf16.mxu0 0
        %698 = vmatpush2.bf16.msra.mxu0 0
        %699 = vmatprep.subr.bf16.mxu0 0
        %700 = vmatpush2.bf16.msra.mxu0 0
        %701 = vmatprep.mubr.bf16.mxu0 0
        %702 = vmatmul.mubr.bf16.gmra.mxu0 %v667
        %v703 = vpop.f32.mrf.mxu0
        %v704 = vadd.f32 0.0, %v703
        %v705 = vpop.f32.mrf.mxu0
        %v706 = vpop.f32.mrf.mxu0
        %v707 = vpop.f32.mrf.mxu0
        %708 = vdwg.mxu0
        %v709 = vld [vmem:[#allocation2] sm:$0xff]
        %v710 = vmul.f32 %v704, 0.7
        %712 = vrot.lane.b32.xlu0 %v710, 16
        %v713 = vpop.permute.xlu0 %712
        %v715 = vadd.f32 %v709, %v713
        %vm716 = vcmask 195712
        %717 = vst.msk [vmem:[#allocation2] sm:$0xff] %vm716, %v715
        %718 = vset.pattern.permute.xlu0 3
        %719 = vperm.xlu0 %718, %v432
        %v720 = vpop.permute.xlu0 %719
        %v722 = vlaneseq
        %v723 = vshrl.u32 %v722, 7
        %v724 = vsub.s32 3, %v723
        %v725 = vrot.slane %v476, %v724
        %v726 = vadd.f32 %v720, %v725
        %vm727 = vcmp.ge.f32.partialorder %v726, 0.0
        %v728 = vmul.f32 %v726, 0.2
        %v729 = vsel %vm727, %v726, %v728
        %v730 = vadd.f32 %v729, %v482
        %v731 = vsel %vm497, %v730, -inf
        %732 = vmax.xlane.f32.xlu0 %v731
        %v733 = vpop.xlane.xlu0 %732
        %v734 = vsub.f32 %v730, %v733
        %v735 = vmul.f32 %v734, 1.442695
        %v736 = vpow.pop %v735
        %v737 = vsel %vm497, %v736, 0.0
        %738 = vadd.xlane.f32.xlu0 %v737
        %v739 = vpop.xlane.xlu0 %738
        %v740 = vrcp.pop %v739
        %v741 = vmul.f32 %v736, %v740
        %v742 = vpack.c.bf16 %v741, %v741
        %743 = vrot.lane.b32.xlu0 %v389, 104
        %v744 = vpop.permute.xlu0 %743
        %v747 = vsel %vm497, %v742, 0
        %749 = vmatprep.subr.bf16.mxu0 0
        %750 = vmatpush1.bf16.msra.mxu0 0
        %751 = vmatprep.subr.bf16.mxu0 0
        %752 = vmatpush1.bf16.msra.mxu0 0
        %753 = vmatprep.subr.bf16.mxu0 0
        %754 = vmatpush1.bf16.msra.mxu0 0
        %755 = vmatprep.subr.bf16.mxu0 0
        %756 = vmatpush1.bf16.msra.mxu0 0
        %757 = vmatprep.subr.bf16.mxu0 0
        %758 = vmatpush1.bf16.msra.mxu0 0
        %759 = vmatprep.subr.bf16.mxu0 0
        %760 = vmatpush1.bf16.msra.mxu0 0
        %761 = vmatprep.subr.bf16.mxu0 0
        %762 = vmatpush1.bf16.msra.mxu0 0
        %763 = vmatprep.subr.bf16.mxu0 0
        %764 = vmatpush1.bf16.msra.mxu0 %v744
        %765 = vmatprep.subr.bf16.mxu0 0
        %766 = vmatpush2.bf16.msra.mxu0 0
        %767 = vmatprep.subr.bf16.mxu0 0
        %768 = vmatpush2.bf16.msra.mxu0 0
        %769 = vmatprep.subr.bf16.mxu0 0
        %770 = vmatpush2.bf16.msra.mxu0 0
        %771 = vmatprep.subr.bf16.mxu0 0
        %772 = vmatpush2.bf16.msra.mxu0 0
        %773 = vmatprep.subr.bf16.mxu0 0
        %774 = vmatpush2.bf16.msra.mxu0 0
        %775 = vmatprep.subr.bf16.mxu0 0
        %776 = vmatpush2.bf16.msra.mxu0 0
        %777 = vmatprep.subr.bf16.mxu0 0
        %778 = vmatpush2.bf16.msra.mxu0 0
        %779 = vmatprep.subr.bf16.mxu0 0
        %780 = vmatpush2.bf16.msra.mxu0 0
        %781 = vmatprep.mubr.bf16.mxu0 0
        %782 = vmatmul.mubr.bf16.gmra.mxu0 %v747
        %v783 = vpop.f32.mrf.mxu0
        %v784 = vadd.f32 0.0, %v783
        %v785 = vpop.f32.mrf.mxu0
        %v786 = vpop.f32.mrf.mxu0
        %v787 = vpop.f32.mrf.mxu0
        %788 = vdwg.mxu0
        %v789 = vld [vmem:[#allocation2] sm:$0xff]
        %v790 = vmul.f32 %v784, 0.7
        %792 = vrot.lane.b32.xlu0 %v790, 24
        %v793 = vpop.permute.xlu0 %792
        %v795 = vadd.f32 %v789, %v793
        %vm796 = vcmask 261312
        %797 = vst.msk [vmem:[#allocation2] sm:$0xff] %vm796, %v795
        %s798 = scalar_lea.vmem %s296, 8 [#allocation3]
        %v799 = vld [vmem:[%s798] sm:$0xff]
        %800 = vset.pattern.permute.xlu0 4
        %801 = vperm.xlu0 %800, %v432
        %v802 = vpop.permute.xlu0 %801
        %v804 = vlaneseq
        %v805 = vshrl.u32 %v804, 7
        %v806 = vsub.s32 4, %v805
        %v807 = vrot.slane %v476, %v806
        %v808 = vadd.f32 %v802, %v807
        %vm809 = vcmp.ge.f32.partialorder %v808, 0.0
        %v810 = vmul.f32 %v808, 0.2
        %v811 = vsel %vm809, %v808, %v810
        %v812 = vadd.f32 %v811, %v799
        %v813 = vsel %vm497, %v812, -inf
        %814 = vmax.xlane.f32.xlu0 %v813
        %v815 = vpop.xlane.xlu0 %814
        %v816 = vsub.f32 %v812, %v815
        %v817 = vmul.f32 %v816, 1.442695
        %v818 = vpow.pop %v817
        %v819 = vsel %vm497, %v818, 0.0
        %820 = vadd.xlane.f32.xlu0 %v819
        %v821 = vpop.xlane.xlu0 %820
        %v822 = vrcp.pop %v821
        %v823 = vmul.f32 %v818, %v822
        %v824 = vpack.c.bf16 %v823, %v823
        %825 = vrot.lane.b32.xlu0 %v389, 96
        %v826 = vpop.permute.xlu0 %825
        %v829 = vsel %vm497, %v824, 0
        %831 = vmatprep.subr.bf16.mxu0 0
        %832 = vmatpush1.bf16.msra.mxu0 0
        %833 = vmatprep.subr.bf16.mxu0 0
        %834 = vmatpush1.bf16.msra.mxu0 0
        %835 = vmatprep.subr.bf16.mxu0 0
        %836 = vmatpush1.bf16.msra.mxu0 0
        %837 = vmatprep.subr.bf16.mxu0 0
        %838 = vmatpush1.bf16.msra.mxu0 0
        %839 = vmatprep.subr.bf16.mxu0 0
        %840 = vmatpush1.bf16.msra.mxu0 0
        %841 = vmatprep.subr.bf16.mxu0 0
        %842 = vmatpush1.bf16.msra.mxu0 0
        %843 = vmatprep.subr.bf16.mxu0 0
        %844 = vmatpush1.bf16.msra.mxu0 0
        %845 = vmatprep.subr.bf16.mxu0 0
        %846 = vmatpush1.bf16.msra.mxu0 %v826
        %847 = vmatprep.subr.bf16.mxu0 0
        %848 = vmatpush2.bf16.msra.mxu0 0
        %849 = vmatprep.subr.bf16.mxu0 0
        %850 = vmatpush2.bf16.msra.mxu0 0
        %851 = vmatprep.subr.bf16.mxu0 0
        %852 = vmatpush2.bf16.msra.mxu0 0
        %853 = vmatprep.subr.bf16.mxu0 0
        %854 = vmatpush2.bf16.msra.mxu0 0
        %855 = vmatprep.subr.bf16.mxu0 0
        %856 = vmatpush2.bf16.msra.mxu0 0
        %857 = vmatprep.subr.bf16.mxu0 0
        %858 = vmatpush2.bf16.msra.mxu0 0
        %859 = vmatprep.subr.bf16.mxu0 0
        %860 = vmatpush2.bf16.msra.mxu0 0
        %861 = vmatprep.subr.bf16.mxu0 0
        %862 = vmatpush2.bf16.msra.mxu0 0
        %863 = vmatprep.mubr.bf16.mxu0 0
        %864 = vmatmul.mubr.bf16.gmra.mxu0 %v829
        %v865 = vpop.f32.mrf.mxu0
        %v866 = vadd.f32 0.0, %v865
        %v867 = vpop.f32.mrf.mxu0
        %v868 = vpop.f32.mrf.mxu0
        %v869 = vpop.f32.mrf.mxu0
        %870 = vdwg.mxu0
        %v871 = vld [vmem:[#allocation2] sm:$0xff]
        %v872 = vmul.f32 %v866, 0.3
        %v873 = vadd.f32 %v871, %v872
        %874 = vst.msk [vmem:[#allocation2] sm:$0xff] %vm340, %v873
        %875 = vset.pattern.permute.xlu0 5
        %876 = vperm.xlu0 %875, %v432
        %v877 = vpop.permute.xlu0 %876
        %v879 = vlaneseq
        %v880 = vshrl.u32 %v879, 7
        %v881 = vsub.s32 5, %v880
        %v882 = vrot.slane %v476, %v881
        %v883 = vadd.f32 %v877, %v882
        %vm884 = vcmp.ge.f32.partialorder %v883, 0.0
        %v885 = vmul.f32 %v883, 0.2
        %v886 = vsel %vm884, %v883, %v885
        %v887 = vadd.f32 %v886, %v799
        %v888 = vsel %vm497, %v887, -inf
        %889 = vmax.xlane.f32.xlu0 %v888
        %v890 = vpop.xlane.xlu0 %889
        %v891 = vsub.f32 %v887, %v890
        %v892 = vmul.f32 %v891, 1.442695
        %v893 = vpow.pop %v892
        %v894 = vsel %vm497, %v893, 0.0
        %895 = vadd.xlane.f32.xlu0 %v894
        %v896 = vpop.xlane.xlu0 %895
        %v897 = vrcp.pop %v896
        %v898 = vmul.f32 %v893, %v897
        %v899 = vpack.c.bf16 %v898, %v898
        %900 = vrot.lane.b32.xlu0 %v389, 88
        %v901 = vpop.permute.xlu0 %900
        %v904 = vsel %vm497, %v899, 0
        %906 = vmatprep.subr.bf16.mxu0 0
        %907 = vmatpush1.bf16.msra.mxu0 0
        %908 = vmatprep.subr.bf16.mxu0 0
        %909 = vmatpush1.bf16.msra.mxu0 0
        %910 = vmatprep.subr.bf16.mxu0 0
        %911 = vmatpush1.bf16.msra.mxu0 0
        %912 = vmatprep.subr.bf16.mxu0 0
        %913 = vmatpush1.bf16.msra.mxu0 0
        %914 = vmatprep.subr.bf16.mxu0 0
        %915 = vmatpush1.bf16.msra.mxu0 0
        %916 = vmatprep.subr.bf16.mxu0 0
        %917 = vmatpush1.bf16.msra.mxu0 0
        %918 = vmatprep.subr.bf16.mxu0 0
        %919 = vmatpush1.bf16.msra.mxu0 0
        %920 = vmatprep.subr.bf16.mxu0 0
        %921 = vmatpush1.bf16.msra.mxu0 %v901
        %922 = vmatprep.subr.bf16.mxu0 0
        %923 = vmatpush2.bf16.msra.mxu0 0
        %924 = vmatprep.subr.bf16.mxu0 0
        %925 = vmatpush2.bf16.msra.mxu0 0
        %926 = vmatprep.subr.bf16.mxu0 0
        %927 = vmatpush2.bf16.msra.mxu0 0
        %928 = vmatprep.subr.bf16.mxu0 0
        %929 = vmatpush2.bf16.msra.mxu0 0
        %930 = vmatprep.subr.bf16.mxu0 0
        %931 = vmatpush2.bf16.msra.mxu0 0
        %932 = vmatprep.subr.bf16.mxu0 0
        %933 = vmatpush2.bf16.msra.mxu0 0
        %934 = vmatprep.subr.bf16.mxu0 0
        %935 = vmatpush2.bf16.msra.mxu0 0
        %936 = vmatprep.subr.bf16.mxu0 0
        %937 = vmatpush2.bf16.msra.mxu0 0
        %938 = vmatprep.mubr.bf16.mxu0 0
        %939 = vmatmul.mubr.bf16.gmra.mxu0 %v904
        %v940 = vpop.f32.mrf.mxu0
        %v941 = vadd.f32 0.0, %v940
        %v942 = vpop.f32.mrf.mxu0
        %v943 = vpop.f32.mrf.mxu0
        %v944 = vpop.f32.mrf.mxu0
        %945 = vdwg.mxu0
        %v946 = vld [vmem:[#allocation2] sm:$0xff]
        %v947 = vmul.f32 %v941, 0.3
        %949 = vrot.lane.b32.xlu0 %v947, 8
        %v950 = vpop.permute.xlu0 %949
        %v952 = vadd.f32 %v946, %v950
        %953 = vst.msk [vmem:[#allocation2] sm:$0xff] %vm636, %v952
        %954 = vset.pattern.permute.xlu0 6
        %955 = vperm.xlu0 %954, %v432
        %v956 = vpop.permute.xlu0 %955
        %v958 = vlaneseq
        %v959 = vshrl.u32 %v958, 7
        %v960 = vsub.s32 6, %v959
        %v961 = vrot.slane %v476, %v960
        %v962 = vadd.f32 %v956, %v961
        %vm963 = vcmp.ge.f32.partialorder %v962, 0.0
        %v964 = vmul.f32 %v962, 0.2
        %v965 = vsel %vm963, %v962, %v964
        %v966 = vadd.f32 %v965, %v799
        %v967 = vsel %vm497, %v966, -inf
        %968 = vmax.xlane.f32.xlu0 %v967
        %v969 = vpop.xlane.xlu0 %968
        %v970 = vsub.f32 %v966, %v969
        %v971 = vmul.f32 %v970, 1.442695
        %v972 = vpow.pop %v971
        %v973 = vsel %vm497, %v972, 0.0
        %974 = vadd.xlane.f32.xlu0 %v973
        %v975 = vpop.xlane.xlu0 %974
        %v976 = vrcp.pop %v975
        %v977 = vmul.f32 %v972, %v976
        %v978 = vpack.c.bf16 %v977, %v977
        %979 = vrot.lane.b32.xlu0 %v389, 80
        %v980 = vpop.permute.xlu0 %979
        %v983 = vsel %vm497, %v978, 0
        %985 = vmatprep.subr.bf16.mxu0 0
        %986 = vmatpush1.bf16.msra.mxu0 0
        %987 = vmatprep.subr.bf16.mxu0 0
        %988 = vmatpush1.bf16.msra.mxu0 0
        %989 = vmatprep.subr.bf16.mxu0 0
        %990 = vmatpush1.bf16.msra.mxu0 0
        %991 = vmatprep.subr.bf16.mxu0 0
        %992 = vmatpush1.bf16.msra.mxu0 0
        %993 = vmatprep.subr.bf16.mxu0 0
        %994 = vmatpush1.bf16.msra.mxu0 0
        %995 = vmatprep.subr.bf16.mxu0 0
        %996 = vmatpush1.bf16.msra.mxu0 0
        %997 = vmatprep.subr.bf16.mxu0 0
        %998 = vmatpush1.bf16.msra.mxu0 0
        %999 = vmatprep.subr.bf16.mxu0 0
        %1000 = vmatpush1.bf16.msra.mxu0 %v980
        %1001 = vmatprep.subr.bf16.mxu0 0
        %1002 = vmatpush2.bf16.msra.mxu0 0
        %1003 = vmatprep.subr.bf16.mxu0 0
        %1004 = vmatpush2.bf16.msra.mxu0 0
        %1005 = vmatprep.subr.bf16.mxu0 0
        %1006 = vmatpush2.bf16.msra.mxu0 0
        %1007 = vmatprep.subr.bf16.mxu0 0
        %1008 = vmatpush2.bf16.msra.mxu0 0
        %1009 = vmatprep.subr.bf16.mxu0 0
        %1010 = vmatpush2.bf16.msra.mxu0 0
        %1011 = vmatprep.subr.bf16.mxu0 0
        %1012 = vmatpush2.bf16.msra.mxu0 0
        %1013 = vmatprep.subr.bf16.mxu0 0
        %1014 = vmatpush2.bf16.msra.mxu0 0
        %1015 = vmatprep.subr.bf16.mxu0 0
        %1016 = vmatpush2.bf16.msra.mxu0 0
        %1017 = vmatprep.mubr.bf16.mxu0 0
        %1018 = vmatmul.mubr.bf16.gmra.mxu0 %v983
        %v1019 = vpop.f32.mrf.mxu0
        %v1020 = vadd.f32 0.0, %v1019
        %v1021 = vpop.f32.mrf.mxu0
        %v1022 = vpop.f32.mrf.mxu0
        %v1023 = vpop.f32.mrf.mxu0
        %1024 = vdwg.mxu0
        %v1025 = vld [vmem:[#allocation2] sm:$0xff]
        %v1026 = vmul.f32 %v1020, 0.3
        %1028 = vrot.lane.b32.xlu0 %v1026, 16
        %v1029 = vpop.permute.xlu0 %1028
        %v1031 = vadd.f32 %v1025, %v1029
        %1032 = vst.msk [vmem:[#allocation2] sm:$0xff] %vm716, %v1031
        %1033 = vset.pattern.permute.xlu0 7
        %1034 = vperm.xlu0 %1033, %v432
        %v1035 = vpop.permute.xlu0 %1034
        %v1037 = vlaneseq
        %v1038 = vshrl.u32 %v1037, 7
        %v1039 = vsub.s32 7, %v1038
        %v1040 = vrot.slane %v476, %v1039
        %v1041 = vadd.f32 %v1035, %v1040
        %vm1042 = vcmp.ge.f32.partialorder %v1041, 0.0
        %v1043 = vmul.f32 %v1041, 0.2
        %v1044 = vsel %vm1042, %v1041, %v1043
        %v1045 = vadd.f32 %v1044, %v799
        %v1046 = vsel %vm497, %v1045, -inf
        %1047 = vmax.xlane.f32.xlu0 %v1046
        %v1048 = vpop.xlane.xlu0 %1047
        %v1049 = vsub.f32 %v1045, %v1048
        %v1050 = vmul.f32 %v1049, 1.442695
        %v1051 = vpow.pop %v1050
        %v1052 = vsel %vm497, %v1051, 0.0
        %1053 = vadd.xlane.f32.xlu0 %v1052
        %v1054 = vpop.xlane.xlu0 %1053
        %v1055 = vrcp.pop %v1054
        %v1056 = vmul.f32 %v1051, %v1055
        %v1057 = vpack.c.bf16 %v1056, %v1056
        %1058 = vrot.lane.b32.xlu0 %v389, 72
        %v1059 = vpop.permute.xlu0 %1058
        %v1062 = vsel %vm497, %v1057, 0
        %1064 = vmatprep.subr.bf16.mxu0 0
        %1065 = vmatpush1.bf16.msra.mxu0 0
        %1066 = vmatprep.subr.bf16.mxu0 0
        %1067 = vmatpush1.bf16.msra.mxu0 0
        %1068 = vmatprep.subr.bf16.mxu0 0
        %1069 = vmatpush1.bf16.msra.mxu0 0
        %1070 = vmatprep.subr.bf16.mxu0 0
        %1071 = vmatpush1.bf16.msra.mxu0 0
        %1072 = vmatprep.subr.bf16.mxu0 0
        %1073 = vmatpush1.bf16.msra.mxu0 0
        %1074 = vmatprep.subr.bf16.mxu0 0
        %1075 = vmatpush1.bf16.msra.mxu0 0
        %1076 = vmatprep.subr.bf16.mxu0 0
        %1077 = vmatpush1.bf16.msra.mxu0 0
        %1078 = vmatprep.subr.bf16.mxu0 0
        %1079 = vmatpush1.bf16.msra.mxu0 %v1059
        %1080 = vmatprep.subr.bf16.mxu0 0
        %1081 = vmatpush2.bf16.msra.mxu0 0
        %1082 = vmatprep.subr.bf16.mxu0 0
        %1083 = vmatpush2.bf16.msra.mxu0 0
        %1084 = vmatprep.subr.bf16.mxu0 0
        %1085 = vmatpush2.bf16.msra.mxu0 0
        %1086 = vmatprep.subr.bf16.mxu0 0
        %1087 = vmatpush2.bf16.msra.mxu0 0
        %1088 = vmatprep.subr.bf16.mxu0 0
        %1089 = vmatpush2.bf16.msra.mxu0 0
        %1090 = vmatprep.subr.bf16.mxu0 0
        %1091 = vmatpush2.bf16.msra.mxu0 0
        %1092 = vmatprep.subr.bf16.mxu0 0
        %1093 = vmatpush2.bf16.msra.mxu0 0
        %1094 = vmatprep.subr.bf16.mxu0 0
        %1095 = vmatpush2.bf16.msra.mxu0 0
        %1096 = vmatprep.mubr.bf16.mxu0 0
        %1097 = vmatmul.mubr.bf16.gmra.mxu0 %v1062
        %v1098 = vpop.f32.mrf.mxu0
        %v1099 = vadd.f32 0.0, %v1098
        %v1100 = vpop.f32.mrf.mxu0
        %v1101 = vpop.f32.mrf.mxu0
        %v1102 = vpop.f32.mrf.mxu0
        %1103 = vdwg.mxu0
        %v1104 = vld [vmem:[#allocation2] sm:$0xff]
        %v1105 = vmul.f32 %v1099, 0.3
        %1107 = vrot.lane.b32.xlu0 %v1105, 24
        %v1108 = vpop.permute.xlu0 %1107
        %v1110 = vadd.f32 %v1104, %v1108
        %1111 = vst.msk [vmem:[#allocation2] sm:$0xff] %vm796, %v1110
        %v1112 = vld [vmem:[#allocation2] sm:$0xff]
        %v1113 = vld [vmem:[%s6] sm:$0x1]
        %v1115 = vlaneseq
        %v1116 = vshrl.u32 %v1115, 7
        %v1117 = vsub.s32 0, %v1116
        %v1118 = vrot.slane %v1113, %v1117
        %v1120 = vadd.f32 %v1112, %v1118
        %1121 = vst [vmem:[%s328] sm:$0xff] %v1120
        %s1122 = sand.u32 %s186, 1
        %s1123 = scalar_lea.sflag [#allocation5], %s1122
        %s1124 = sand.u32 %s186, 1
        %s1125 = smul.addr %s1124, 8
        %s1126 = scalar_lea.vmem [#allocation4], %s1125
        // Predicated region
        $region87: #{tpu_custom_call.1} parent=81 // pred_check
          %p1127 = pneg %p196
        $region88: #{tpu_custom_call.1} parent=81 // pred_check_branch
          %1129 = sbr.rel (%p1127) target = $region90
        $region89: #{tpu_custom_call.1} parent=81 // pred_region
          %s1131 = ssub.s32 128, 128
          %1132 = vsyncadd %s1123, %s1131
          %s1133 = smul.addr %s21, 128
          %s1134 = scalar_lea.hbm %s7, %s1133
          %s1136 = sshll.u32 %s1126, 4
          %s1137 = int_to_ptr.vmem [resolvable:$true] %s1136
          %1139 = dma.vmem_to_hbm [thread:$0]  %s1137, 128, %s1134, %s1123
        $region90: #{tpu_custom_call.1} parent=81 // pred_fallthru
          _
      $region82: #{tpu_custom_call.1} parent=5 // pred_fallthru
        _
      %p1140 = scmp.le.s32.totalorder 2, %s16
      // Predicated region
      $region91: #{tpu_custom_call.1} parent=5 // pred_check
        %p1141 = pneg %p1140
      $region92: #{tpu_custom_call.1} parent=5 // pred_check_branch
        %1143 = sbr.rel (%p1141) target = $region94
      $region93: #{tpu_custom_call.1} parent=5 // pred_region
        %s1144 = ssub.s32 %s16, 2
        // Predicated region
        $region95: #{tpu_custom_call.1} parent=93 // pred_check
          %p1145 = pneg %p202
        $region96: #{tpu_custom_call.1} parent=93 // pred_check_branch
          %1147 = sbr.rel (%p1145) target = $region98
        $region97: #{tpu_custom_call.1} parent=93 // pred_region
          %s1148 = sand.u32 %s187, 1
          %s1149 = scalar_lea.sflag [#allocation5], %s1148
          %s1150 = sand.u32 %s187, 1
          %s1151 = smul.addr %s1150, 8
          %s1152 = scalar_lea.vmem [#allocation4], %s1151
          %1153 = dma.done %s1149, 128
        $region98: #{tpu_custom_call.1} parent=93 // pred_fallthru
          _
      $region94: #{tpu_custom_call.1} parent=5 // pred_fallthru
        _
    $region6: #{tpu_custom_call.1} parent=1 // loop_footer
      %s20 = sadd.s32 1, %s16
    $region7: #{tpu_custom_call.1} parent=1 // loop_footer_branch
      %15 = sbr.rel target = $region3
    $region8: #{tpu_custom_call.1} parent=1 // loop_exit
      _
    %1154 = vsyncpa [#allocation5], 1
    %s1155 = scalar_lea.sflag [#allocation5], 1
    %1156 = vsyncpa %s1155, 1

</llo_original>
